<compile_context>
chip_gen: v7x
topology: tpu7x:2x2x1
jax: 0.10.0
libtpu: 0.0.40
codegen_flags: <defaults>
</compile_context>

<pallas_src>
import jax
import jax.numpy as jnp
import numpy as np
from jax.experimental import pallas as pl
from jax.experimental.pallas import tpu as pltpu

# ---- small config consistent with ModelArgs ----
B, S = 2, 8
DIM = 64
N_HEADS = 4
N_KV_HEADS = 2
HEAD_DIM = DIM // N_HEADS            # 16
N_REP = N_HEADS // N_KV_HEADS        # 2
KV_DIM = N_KV_HEADS * HEAD_DIM       # 32
QKV_DIM = DIM + 2 * KV_DIM           # 128 (lane-dense fused projection width)
HIDDEN = 128                         # args.hidden_dim given explicitly
EPS = 1e-5
NEG_INF = -1e9
BS = B * S                           # 16 rows, batch folded into sublanes


def _rmsnorm(x, w):
    ms = jnp.mean(x * x, axis=-1, keepdims=True)
    return x * jax.lax.rsqrt(ms + EPS) * w


def _dot(a, b):
    return jnp.dot(a, b, preferred_element_type=jnp.float32)


def _dot_bt(a, b):
    # a @ b.T without an explicit transpose
    return jax.lax.dot_general(a, b, (((1,), (1,)), ((), ())),
                               preferred_element_type=jnp.float32)


def block_kernel(x_ref, anorm_ref, fnorm_ref, wqkv_ref, wo_ref, w13_ref,
                 w2_ref, cos_ref, sin_ref, rot_ref, mask_ref, out_ref):
    x = x_ref[...]                                    # (BS, DIM)
    scale = 1.0 / jnp.sqrt(jnp.float32(HEAD_DIM))

    # ---------------- attention ----------------
    xn = _rmsnorm(x, anorm_ref[...])
    qkv = _dot(xn, wqkv_ref[...])                     # (BS, 128) = [q|k|v]

    # Fused RoPE on q and k; v columns pass through (cos=1, sin=0, rot block=0).
    qkv = qkv * cos_ref[...] + _dot(qkv, rot_ref[...]) * sin_ref[...]

    mask = mask_ref[...]                              # (BS, BS) block-diag causal
    wo = wo_ref[...]                                  # (DIM, DIM)

    acc = jnp.zeros((BS, DIM), jnp.float32)
    for h in range(N_HEADS):
        hk = h // N_REP                               # repeat_kv via indexing
        qh = qkv[:, h * HEAD_DIM:(h + 1) * HEAD_DIM]                       # (BS, hd)
        kh = qkv[:, DIM + hk * HEAD_DIM:DIM + (hk + 1) * HEAD_DIM]         # (BS, hd)
        vh = qkv[:, DIM + KV_DIM + hk * HEAD_DIM:
                 DIM + KV_DIM + (hk + 1) * HEAD_DIM]                       # (BS, hd)
        s = _dot_bt(qh, kh) * scale + mask                                 # (BS, BS)
        s = s - jnp.max(s, axis=-1, keepdims=True)
        p = jnp.exp(s)
        p = p * pl.reciprocal(jnp.sum(p, axis=-1, keepdims=True), approx=True)
        # accumulate per-head output through Wo row slice (no concat)
        acc = acc + _dot(_dot(p, vh), wo[h * HEAD_DIM:(h + 1) * HEAD_DIM, :])

    h_res = x + acc                                   # residual (BS, DIM)

    # ---------------- feed-forward ----------------
    hn = _rmsnorm(h_res, fnorm_ref[...])
    g = _dot(hn, w13_ref[...])                        # (BS, 2*HIDDEN) lane-dense
    a = g[:, :HIDDEN]
    b3 = g[:, HIDDEN:]
    silu = a * jax.nn.sigmoid(a)
    out_ref[...] = h_res + _dot(silu * b3, w2_ref[...])


def _full_spec(arr):
    return pl.BlockSpec(arr.shape, lambda i: (0,) * arr.ndim)


def transformer_block(x, params, cos_qkv, sin_qkv, rot_qkv, mask_flat):
    b, s, d = x.shape
    x2 = x.reshape(b * s, d)                          # free metadata reshape in HBM

    args = (x2, params["attn_norm"], params["ffn_norm"], params["wqkv"],
            params["wo"], params["w13"], params["w2"],
            cos_qkv, sin_qkv, rot_qkv, mask_flat)

    out2 = pl.pallas_call(
        block_kernel,
        out_shape=jax.ShapeDtypeStruct((b * s, d), jnp.float32),
        grid=(1,),
        in_specs=[_full_spec(a) for a in args],
        out_specs=_full_spec(x2),
        compiler_params=pltpu.CompilerParams(
            dimension_semantics=("arbitrary",)),
    )(*args)
    return out2.reshape(b, s, d)


# ---- pure-JAX reference (faithful port of the PyTorch forward) ----
def ref_block(x, params, freqs_cos, freqs_sin, mask_ss):
    def rmsnorm(t, w):
        ms = jnp.mean(t * t, axis=-1, keepdims=True)
        return t * jax.lax.rsqrt(ms + EPS) * w.reshape(-1)

    xn = rmsnorm(x, params["attn_norm"])
    q = (xn @ params["wq"]).reshape(B, S, N_HEADS, HEAD_DIM)
    k = (xn @ params["wk"]).reshape(B, S, N_KV_HEADS, HEAD_DIM)
    v = (xn @ params["wv"]).reshape(B, S, N_KV_HEADS, HEAD_DIM)

    def rope(t):
        tr, ti = t[..., 0::2], t[..., 1::2]
        fc = freqs_cos[None, :, None, :]
        fs = freqs_sin[None, :, None, :]
        outr = tr * fc - ti * fs
        outi = tr * fs + ti * fc
        return jnp.stack([outr, outi], axis=-1).reshape(t.shape)

    q, k = rope(q), rope(k)
    k = jnp.repeat(k, N_REP, axis=2)
    v = jnp.repeat(v, N_REP, axis=2)
    q, k, v = (t.transpose(0, 2, 1, 3) for t in (q, k, v))
    scores = q @ k.transpose(0, 1, 3, 2) / np.sqrt(HEAD_DIM) + mask_ss
    p = jax.nn.softmax(scores, axis=-1)
    o = (p @ v).transpose(0, 2, 1, 3).reshape(B, S, DIM)
    h = x + o @ params["wo"]

    hn = rmsnorm(h, params["ffn_norm"])
    y = (jax.nn.silu(hn @ params["w1"]) * (hn @ params["w3"])) @ params["w2"]
    return h + y


if __name__ == "__main__":
    key = jax.random.PRNGKey(0)
    ks = jax.random.split(key, 8)
    init = lambda k, shape: (0.02 * jax.random.normal(k, shape)).astype(jnp.float32)

    params = {
        "wq": init(ks[0], (DIM, DIM)),
        "wk": init(ks[1], (DIM, KV_DIM)),
        "wv": init(ks[2], (DIM, KV_DIM)),
        "wo": init(ks[3], (DIM, DIM)),
        "w1": init(ks[4], (DIM, HIDDEN)),
        "w2": init(ks[5], (HIDDEN, DIM)),
        "w3": init(ks[6], (DIM, HIDDEN)),
        "attn_norm": jnp.ones((1, DIM), jnp.float32),
        "ffn_norm": jnp.ones((1, DIM), jnp.float32),
    }
    # fused lane-dense weights
    params["wqkv"] = jnp.concatenate(
        [params["wq"], params["wk"], params["wv"]], axis=1)      # (64, 128)
    params["w13"] = jnp.concatenate(
        [params["w1"], params["w3"]], axis=1)                    # (64, 256)

    x = init(ks[7], (B, S, DIM)) * 50.0  # scale up so values are O(1)

    # rotary tables: half-dim for the reference, fused interleaved for kernel
    inv_freq = 1.0 / (10000.0 ** (np.arange(0, HEAD_DIM, 2) / HEAD_DIM))
    t = np.arange(S)
    freqs = np.outer(t, inv_freq)                      # (S, HEAD_DIM//2)
    freqs_cos = jnp.asarray(np.cos(freqs), jnp.float32)
    freqs_sin = jnp.asarray(np.sin(freqs), jnp.float32)

    cos_i = np.repeat(np.cos(freqs), 2, axis=-1)       # (S, 16) interleaved
    sin_i = np.repeat(np.sin(freqs), 2, axis=-1)
    cos_row = np.concatenate([np.tile(cos_i, (1, N_HEADS)),       # q: (S, 64)
                              np.tile(cos_i, (1, N_KV_HEADS)),    # k: (S, 32)
                              np.ones((S, KV_DIM))], axis=-1)     # v passthrough
    sin_row = np.concatenate([np.tile(sin_i, (1, N_HEADS)),
                              np.tile(sin_i, (1, N_KV_HEADS)),
                              np.zeros((S, KV_DIM))], axis=-1)
    cos_qkv = jnp.asarray(np.tile(cos_row, (B, 1)), jnp.float32)  # (BS, 128)
    sin_qkv = jnp.asarray(np.tile(sin_row, (B, 1)), jnp.float32)

    # block-diagonal pair-swap: (x @ P)[2i] = -x[2i+1], (x @ P)[2i+1] = x[2i]
    P = np.zeros((HEAD_DIM, HEAD_DIM), np.float32)
    for i in range(HEAD_DIM // 2):
        P[2 * i + 1, 2 * i] = -1.0
        P[2 * i, 2 * i + 1] = 1.0
    rot = np.zeros((QKV_DIM, QKV_DIM), np.float32)
    for blk in range(N_HEADS + N_KV_HEADS):            # rotate q & k heads only
        rot[blk * HEAD_DIM:(blk + 1) * HEAD_DIM,
            blk * HEAD_DIM:(blk + 1) * HEAD_DIM] = P
    rot_qkv = jnp.asarray(rot)

    # masks: (S,S) causal for the reference; block-diag causal over flattened
    # (B*S, B*S) rows for the fused kernel (kills cross-batch attention).
    causal = np.tril(np.ones((S, S), bool))
    mask_ss = jnp.asarray(np.where(causal, 0.0, NEG_INF), jnp.float32)
    big = np.full((BS, BS), NEG_INF, np.float32)
    for bb in range(B):
        big[bb * S:(bb + 1) * S, bb * S:(bb + 1) * S] = np.where(causal, 0.0, NEG_INF)
    mask_flat = jnp.asarray(big)

    out = transformer_block(x, params, cos_qkv, sin_qkv, rot_qkv, mask_flat)
    out = jax.block_until_ready(out)

    ref = ref_block(x, params, freqs_cos, freqs_sin, mask_ss)
    # tolerance loosened slightly for pl.reciprocal(approx=True) in the softmax
    np.testing.assert_allclose(np.asarray(out), np.asarray(ref),
                               rtol=2e-3, atol=2e-3)
    print("KERNEL_OK")
</pallas_src>

<mosaic_0001>
module attributes {stable_mosaic.version = 11 : i64} {
  func.func @block_kernel(%arg0: i32, %arg1: memref<16x64xf32, #tpu.memory_space<vmem>>, %arg2: memref<1x64xf32, #tpu.memory_space<vmem>>, %arg3: memref<1x64xf32, #tpu.memory_space<vmem>>, %arg4: memref<64x128xf32, #tpu.memory_space<vmem>>, %arg5: memref<64x64xf32, #tpu.memory_space<vmem>>, %arg6: memref<64x256xf32, #tpu.memory_space<vmem>>, %arg7: memref<128x64xf32, #tpu.memory_space<vmem>>, %arg8: memref<16x128xf32, #tpu.memory_space<vmem>>, %arg9: memref<16x128xf32, #tpu.memory_space<vmem>>, %arg10: memref<128x128xf32, #tpu.memory_space<vmem>>, %arg11: memref<16x16xf32, #tpu.memory_space<vmem>>, %arg12: memref<16x64xf32, #tpu.memory_space<vmem>>) attributes {dimension_semantics = [#tpu.dimension_semantics<arbitrary>], iteration_bounds = array<i64: 1>, scalar_prefetch = 0 : i64, scratch_operands = 0 : i64, tpu.core_type = #tpu.core_type<tc>, window_params = [{pipeline_mode = #tpu.pipeline_mode<synchronous>, transform_indices = @transform_0, window_bounds = array<i64: 16, 64>}, {pipeline_mode = #tpu.pipeline_mode<synchronous>, transform_indices = @transform_1, window_bounds = array<i64: 1, 64>}, {pipeline_mode = #tpu.pipeline_mode<synchronous>, transform_indices = @transform_2, window_bounds = array<i64: 1, 64>}, {pipeline_mode = #tpu.pipeline_mode<synchronous>, transform_indices = @transform_3, window_bounds = array<i64: 64, 128>}, {pipeline_mode = #tpu.pipeline_mode<synchronous>, transform_indices = @transform_4, window_bounds = array<i64: 64, 64>}, {pipeline_mode = #tpu.pipeline_mode<synchronous>, transform_indices = @transform_5, window_bounds = array<i64: 64, 256>}, {pipeline_mode = #tpu.pipeline_mode<synchronous>, transform_indices = @transform_6, window_bounds = array<i64: 128, 64>}, {pipeline_mode = #tpu.pipeline_mode<synchronous>, transform_indices = @transform_7, window_bounds = array<i64: 16, 128>}, {pipeline_mode = #tpu.pipeline_mode<synchronous>, transform_indices = @transform_8, window_bounds = array<i64: 16, 128>}, {pipeline_mode = #tpu.pipeline_mode<synchronous>, transform_indices = @transform_9, window_bounds = array<i64: 128, 128>}, {pipeline_mode = #tpu.pipeline_mode<synchronous>, transform_indices = @transform_10, window_bounds = array<i64: 16, 16>}, {pipeline_mode = #tpu.pipeline_mode<synchronous>, transform_indices = @transform_11, window_bounds = array<i64: 16, 64>}]} {
    %c0 = arith.constant 0 : index
    %c0_0 = arith.constant 0 : index
    %0 = vector.load %arg1[%c0, %c0_0] : memref<16x64xf32, #tpu.memory_space<vmem>>, vector<16x64xf32>
    %cst = arith.constant 1.600000e+01 : f32
    %1 = math.sqrt %cst : f32
    %cst_1 = arith.constant 1.000000e+00 : f32
    %2 = arith.divf %cst_1, %1 : f32
    %c0_2 = arith.constant 0 : index
    %c0_3 = arith.constant 0 : index
    %3 = vector.load %arg2[%c0_2, %c0_3] : memref<1x64xf32, #tpu.memory_space<vmem>>, vector<1x64xf32>
    %4 = arith.mulf %0, %0 : vector<16x64xf32>
    %cst_4 = arith.constant dense<0.000000e+00> : vector<16xf32>
    %5 = vector.multi_reduction <add>, %4, %cst_4 [1] : vector<16x64xf32> to vector<16xf32>
    %6 = vector.shape_cast %5 : vector<16xf32> to vector<16x1xf32>
    %cst_5 = arith.constant 6.400000e+01 : f32
    %7 = vector.broadcast %cst_5 : f32 to vector<16x1xf32>
    %8 = arith.divf %6, %7 : vector<16x1xf32>
    %cst_6 = arith.constant 9.99999974E-6 : f32
    %9 = vector.broadcast %cst_6 : f32 to vector<16x1xf32>
    %10 = arith.addf %8, %9 : vector<16x1xf32>
    %11 = math.rsqrt %10 : vector<16x1xf32>
    %12 = vector.broadcast %11 : vector<16x1xf32> to vector<16x64xf32>
    %13 = arith.mulf %0, %12 : vector<16x64xf32>
    %14 = vector.broadcast %3 : vector<1x64xf32> to vector<16x64xf32>
    %15 = arith.mulf %13, %14 : vector<16x64xf32>
    %c0_7 = arith.constant 0 : index
    %c0_8 = arith.constant 0 : index
    %16 = vector.load %arg4[%c0_7, %c0_8] : memref<64x128xf32, #tpu.memory_space<vmem>>, vector<64x128xf32>
    %cst_9 = arith.constant dense<0.000000e+00> : vector<16x128xf32>
    %17 = tpu.matmul %15, %16, %cst_9 {dimension_numbers = #tpu.dot_dimension_numbers<[1], [0], [0], [1], [0, 0, 1, 1], [], []>} : vector<16x64xf32>, vector<64x128xf32>, vector<16x128xf32> -> vector<16x128xf32>
    %c0_10 = arith.constant 0 : index
    %c0_11 = arith.constant 0 : index
    %18 = vector.load %arg8[%c0_10, %c0_11] : memref<16x128xf32, #tpu.memory_space<vmem>>, vector<16x128xf32>
    %19 = arith.mulf %17, %18 : vector<16x128xf32>
    %c0_12 = arith.constant 0 : index
    %c0_13 = arith.constant 0 : index
    %20 = vector.load %arg10[%c0_12, %c0_13] : memref<128x128xf32, #tpu.memory_space<vmem>>, vector<128x128xf32>
    %cst_14 = arith.constant dense<0.000000e+00> : vector<16x128xf32>
    %21 = tpu.matmul %17, %20, %cst_14 {dimension_numbers = #tpu.dot_dimension_numbers<[1], [0], [0], [1], [0, 0, 1, 1], [], []>} : vector<16x128xf32>, vector<128x128xf32>, vector<16x128xf32> -> vector<16x128xf32>
    %c0_15 = arith.constant 0 : index
    %c0_16 = arith.constant 0 : index
    %22 = vector.load %arg9[%c0_15, %c0_16] : memref<16x128xf32, #tpu.memory_space<vmem>>, vector<16x128xf32>
    %23 = arith.mulf %21, %22 : vector<16x128xf32>
    %24 = arith.addf %19, %23 : vector<16x128xf32>
    %c0_17 = arith.constant 0 : index
    %c0_18 = arith.constant 0 : index
    %25 = vector.load %arg11[%c0_17, %c0_18] : memref<16x16xf32, #tpu.memory_space<vmem>>, vector<16x16xf32>
    %c0_19 = arith.constant 0 : index
    %c0_20 = arith.constant 0 : index
    %26 = vector.load %arg5[%c0_19, %c0_20] : memref<64x64xf32, #tpu.memory_space<vmem>>, vector<64x64xf32>
    %cst_21 = arith.constant 0.000000e+00 : f32
    %27 = vector.broadcast %cst_21 : f32 to vector<16x64xf32>
    %28 = vector.extract_strided_slice %24 {offsets = [0, 0], sizes = [16, 16], strides = [1, 1]} : vector<16x128xf32> to vector<16x16xf32>
    %29 = vector.extract_strided_slice %24 {offsets = [0, 64], sizes = [16, 16], strides = [1, 1]} : vector<16x128xf32> to vector<16x16xf32>
    %30 = vector.extract_strided_slice %24 {offsets = [0, 96], sizes = [16, 16], strides = [1, 1]} : vector<16x128xf32> to vector<16x16xf32>
    %cst_22 = arith.constant dense<0.000000e+00> : vector<16x16xf32>
    %31 = tpu.matmul %28, %29, %cst_22 {dimension_numbers = #tpu.dot_dimension_numbers<[1], [1], [0], [0], [0, 0, 1, 0], [], []>} : vector<16x16xf32>, vector<16x16xf32>, vector<16x16xf32> -> vector<16x16xf32>
    %32 = vector.broadcast %2 : f32 to vector<16x16xf32>
    %33 = arith.mulf %31, %32 : vector<16x16xf32>
    %34 = arith.addf %33, %25 : vector<16x16xf32>
    %cst_23 = arith.constant dense<0xFF800000> : vector<16xf32>
    %35 = vector.multi_reduction <maximumf>, %34, %cst_23 [1] : vector<16x16xf32> to vector<16xf32>
    %36 = vector.shape_cast %35 : vector<16xf32> to vector<16x1xf32>
    %37 = vector.broadcast %36 : vector<16x1xf32> to vector<16x16xf32>
    %38 = arith.subf %34, %37 : vector<16x16xf32>
    %39 = math.exp %38 : vector<16x16xf32>
    %cst_24 = arith.constant dense<0.000000e+00> : vector<16xf32>
    %40 = vector.multi_reduction <add>, %39, %cst_24 [1] : vector<16x16xf32> to vector<16xf32>
    %41 = vector.shape_cast %40 : vector<16xf32> to vector<16x1xf32>
    %42 = tpu.reciprocal %41 {approx = true} : vector<16x1xf32> -> vector<16x1xf32>
    %43 = vector.broadcast %42 : vector<16x1xf32> to vector<16x16xf32>
    %44 = arith.mulf %39, %43 : vector<16x16xf32>
    %cst_25 = arith.constant dense<0.000000e+00> : vector<16x16xf32>
    %45 = tpu.matmul %44, %30, %cst_25 {dimension_numbers = #tpu.dot_dimension_numbers<[1], [0], [0], [1], [0, 0, 1, 1], [], []>} : vector<16x16xf32>, vector<16x16xf32>, vector<16x16xf32> -> vector<16x16xf32>
    %46 = vector.extract_strided_slice %26 {offsets = [0, 0], sizes = [16, 64], strides = [1, 1]} : vector<64x64xf32> to vector<16x64xf32>
    %cst_26 = arith.constant dense<0.000000e+00> : vector<16x64xf32>
    %47 = tpu.matmul %45, %46, %cst_26 {dimension_numbers = #tpu.dot_dimension_numbers<[1], [0], [0], [1], [0, 0, 1, 1], [], []>} : vector<16x16xf32>, vector<16x64xf32>, vector<16x64xf32> -> vector<16x64xf32>
    %48 = arith.addf %27, %47 : vector<16x64xf32>
    %49 = vector.extract_strided_slice %24 {offsets = [0, 16], sizes = [16, 16], strides = [1, 1]} : vector<16x128xf32> to vector<16x16xf32>
    %50 = vector.extract_strided_slice %24 {offsets = [0, 64], sizes = [16, 16], strides = [1, 1]} : vector<16x128xf32> to vector<16x16xf32>
    %51 = vector.extract_strided_slice %24 {offsets = [0, 96], sizes = [16, 16], strides = [1, 1]} : vector<16x128xf32> to vector<16x16xf32>
    %cst_27 = arith.constant dense<0.000000e+00> : vector<16x16xf32>
    %52 = tpu.matmul %49, %50, %cst_27 {dimension_numbers = #tpu.dot_dimension_numbers<[1], [1], [0], [0], [0, 0, 1, 0], [], []>} : vector<16x16xf32>, vector<16x16xf32>, vector<16x16xf32> -> vector<16x16xf32>
    %53 = vector.broadcast %2 : f32 to vector<16x16xf32>
    %54 = arith.mulf %52, %53 : vector<16x16xf32>
    %55 = arith.addf %54, %25 : vector<16x16xf32>
    %cst_28 = arith.constant dense<0xFF800000> : vector<16xf32>
    %56 = vector.multi_reduction <maximumf>, %55, %cst_28 [1] : vector<16x16xf32> to vector<16xf32>
    %57 = vector.shape_cast %56 : vector<16xf32> to vector<16x1xf32>
    %58 = vector.broadcast %57 : vector<16x1xf32> to vector<16x16xf32>
    %59 = arith.subf %55, %58 : vector<16x16xf32>
    %60 = math.exp %59 : vector<16x16xf32>
    %cst_29 = arith.constant dense<0.000000e+00> : vector<16xf32>
    %61 = vector.multi_reduction <add>, %60, %cst_29 [1] : vector<16x16xf32> to vector<16xf32>
    %62 = vector.shape_cast %61 : vector<16xf32> to vector<16x1xf32>
    %63 = tpu.reciprocal %62 {approx = true} : vector<16x1xf32> -> vector<16x1xf32>
    %64 = vector.broadcast %63 : vector<16x1xf32> to vector<16x16xf32>
    %65 = arith.mulf %60, %64 : vector<16x16xf32>
    %cst_30 = arith.constant dense<0.000000e+00> : vector<16x16xf32>
    %66 = tpu.matmul %65, %51, %cst_30 {dimension_numbers = #tpu.dot_dimension_numbers<[1], [0], [0], [1], [0, 0, 1, 1], [], []>} : vector<16x16xf32>, vector<16x16xf32>, vector<16x16xf32> -> vector<16x16xf32>
    %67 = vector.extract_strided_slice %26 {offsets = [16, 0], sizes = [16, 64], strides = [1, 1]} : vector<64x64xf32> to vector<16x64xf32>
    %cst_31 = arith.constant dense<0.000000e+00> : vector<16x64xf32>
    %68 = tpu.matmul %66, %67, %cst_31 {dimension_numbers = #tpu.dot_dimension_numbers<[1], [0], [0], [1], [0, 0, 1, 1], [], []>} : vector<16x16xf32>, vector<16x64xf32>, vector<16x64xf32> -> vector<16x64xf32>
    %69 = arith.addf %48, %68 : vector<16x64xf32>
    %70 = vector.extract_strided_slice %24 {offsets = [0, 32], sizes = [16, 16], strides = [1, 1]} : vector<16x128xf32> to vector<16x16xf32>
    %71 = vector.extract_strided_slice %24 {offsets = [0, 80], sizes = [16, 16], strides = [1, 1]} : vector<16x128xf32> to vector<16x16xf32>
    %72 = vector.extract_strided_slice %24 {offsets = [0, 112], sizes = [16, 16], strides = [1, 1]} : vector<16x128xf32> to vector<16x16xf32>
    %cst_32 = arith.constant dense<0.000000e+00> : vector<16x16xf32>
    %73 = tpu.matmul %70, %71, %cst_32 {dimension_numbers = #tpu.dot_dimension_numbers<[1], [1], [0], [0], [0, 0, 1, 0], [], []>} : vector<16x16xf32>, vector<16x16xf32>, vector<16x16xf32> -> vector<16x16xf32>
    %74 = vector.broadcast %2 : f32 to vector<16x16xf32>
    %75 = arith.mulf %73, %74 : vector<16x16xf32>
    %76 = arith.addf %75, %25 : vector<16x16xf32>
    %cst_33 = arith.constant dense<0xFF800000> : vector<16xf32>
    %77 = vector.multi_reduction <maximumf>, %76, %cst_33 [1] : vector<16x16xf32> to vector<16xf32>
    %78 = vector.shape_cast %77 : vector<16xf32> to vector<16x1xf32>
    %79 = vector.broadcast %78 : vector<16x1xf32> to vector<16x16xf32>
    %80 = arith.subf %76, %79 : vector<16x16xf32>
    %81 = math.exp %80 : vector<16x16xf32>
    %cst_34 = arith.constant dense<0.000000e+00> : vector<16xf32>
    %82 = vector.multi_reduction <add>, %81, %cst_34 [1] : vector<16x16xf32> to vector<16xf32>
    %83 = vector.shape_cast %82 : vector<16xf32> to vector<16x1xf32>
    %84 = tpu.reciprocal %83 {approx = true} : vector<16x1xf32> -> vector<16x1xf32>
    %85 = vector.broadcast %84 : vector<16x1xf32> to vector<16x16xf32>
    %86 = arith.mulf %81, %85 : vector<16x16xf32>
    %cst_35 = arith.constant dense<0.000000e+00> : vector<16x16xf32>
    %87 = tpu.matmul %86, %72, %cst_35 {dimension_numbers = #tpu.dot_dimension_numbers<[1], [0], [0], [1], [0, 0, 1, 1], [], []>} : vector<16x16xf32>, vector<16x16xf32>, vector<16x16xf32> -> vector<16x16xf32>
    %88 = vector.extract_strided_slice %26 {offsets = [32, 0], sizes = [16, 64], strides = [1, 1]} : vector<64x64xf32> to vector<16x64xf32>
    %cst_36 = arith.constant dense<0.000000e+00> : vector<16x64xf32>
    %89 = tpu.matmul %87, %88, %cst_36 {dimension_numbers = #tpu.dot_dimension_numbers<[1], [0], [0], [1], [0, 0, 1, 1], [], []>} : vector<16x16xf32>, vector<16x64xf32>, vector<16x64xf32> -> vector<16x64xf32>
    %90 = arith.addf %69, %89 : vector<16x64xf32>
    %91 = vector.extract_strided_slice %24 {offsets = [0, 48], sizes = [16, 16], strides = [1, 1]} : vector<16x128xf32> to vector<16x16xf32>
    %92 = vector.extract_strided_slice %24 {offsets = [0, 80], sizes = [16, 16], strides = [1, 1]} : vector<16x128xf32> to vector<16x16xf32>
    %93 = vector.extract_strided_slice %24 {offsets = [0, 112], sizes = [16, 16], strides = [1, 1]} : vector<16x128xf32> to vector<16x16xf32>
    %cst_37 = arith.constant dense<0.000000e+00> : vector<16x16xf32>
    %94 = tpu.matmul %91, %92, %cst_37 {dimension_numbers = #tpu.dot_dimension_numbers<[1], [1], [0], [0], [0, 0, 1, 0], [], []>} : vector<16x16xf32>, vector<16x16xf32>, vector<16x16xf32> -> vector<16x16xf32>
    %95 = vector.broadcast %2 : f32 to vector<16x16xf32>
    %96 = arith.mulf %94, %95 : vector<16x16xf32>
    %97 = arith.addf %96, %25 : vector<16x16xf32>
    %cst_38 = arith.constant dense<0xFF800000> : vector<16xf32>
    %98 = vector.multi_reduction <maximumf>, %97, %cst_38 [1] : vector<16x16xf32> to vector<16xf32>
    %99 = vector.shape_cast %98 : vector<16xf32> to vector<16x1xf32>
    %100 = vector.broadcast %99 : vector<16x1xf32> to vector<16x16xf32>
    %101 = arith.subf %97, %100 : vector<16x16xf32>
    %102 = math.exp %101 : vector<16x16xf32>
    %cst_39 = arith.constant dense<0.000000e+00> : vector<16xf32>
    %103 = vector.multi_reduction <add>, %102, %cst_39 [1] : vector<16x16xf32> to vector<16xf32>
    %104 = vector.shape_cast %103 : vector<16xf32> to vector<16x1xf32>
    %105 = tpu.reciprocal %104 {approx = true} : vector<16x1xf32> -> vector<16x1xf32>
    %106 = vector.broadcast %105 : vector<16x1xf32> to vector<16x16xf32>
    %107 = arith.mulf %102, %106 : vector<16x16xf32>
    %cst_40 = arith.constant dense<0.000000e+00> : vector<16x16xf32>
    %108 = tpu.matmul %107, %93, %cst_40 {dimension_numbers = #tpu.dot_dimension_numbers<[1], [0], [0], [1], [0, 0, 1, 1], [], []>} : vector<16x16xf32>, vector<16x16xf32>, vector<16x16xf32> -> vector<16x16xf32>
    %109 = vector.extract_strided_slice %26 {offsets = [48, 0], sizes = [16, 64], strides = [1, 1]} : vector<64x64xf32> to vector<16x64xf32>
    %cst_41 = arith.constant dense<0.000000e+00> : vector<16x64xf32>
    %110 = tpu.matmul %108, %109, %cst_41 {dimension_numbers = #tpu.dot_dimension_numbers<[1], [0], [0], [1], [0, 0, 1, 1], [], []>} : vector<16x16xf32>, vector<16x64xf32>, vector<16x64xf32> -> vector<16x64xf32>
    %111 = arith.addf %90, %110 : vector<16x64xf32>
    %112 = arith.addf %0, %111 : vector<16x64xf32>
    %c0_42 = arith.constant 0 : index
    %c0_43 = arith.constant 0 : index
    %113 = vector.load %arg3[%c0_42, %c0_43] : memref<1x64xf32, #tpu.memory_space<vmem>>, vector<1x64xf32>
    %114 = arith.mulf %112, %112 : vector<16x64xf32>
    %cst_44 = arith.constant dense<0.000000e+00> : vector<16xf32>
    %115 = vector.multi_reduction <add>, %114, %cst_44 [1] : vector<16x64xf32> to vector<16xf32>
    %116 = vector.shape_cast %115 : vector<16xf32> to vector<16x1xf32>
    %cst_45 = arith.constant 6.400000e+01 : f32
    %117 = vector.broadcast %cst_45 : f32 to vector<16x1xf32>
    %118 = arith.divf %116, %117 : vector<16x1xf32>
    %cst_46 = arith.constant 9.99999974E-6 : f32
    %119 = vector.broadcast %cst_46 : f32 to vector<16x1xf32>
    %120 = arith.addf %118, %119 : vector<16x1xf32>
    %121 = math.rsqrt %120 : vector<16x1xf32>
    %122 = vector.broadcast %121 : vector<16x1xf32> to vector<16x64xf32>
    %123 = arith.mulf %112, %122 : vector<16x64xf32>
    %124 = vector.broadcast %113 : vector<1x64xf32> to vector<16x64xf32>
    %125 = arith.mulf %123, %124 : vector<16x64xf32>
    %c0_47 = arith.constant 0 : index
    %c0_48 = arith.constant 0 : index
    %126 = vector.load %arg6[%c0_47, %c0_48] : memref<64x256xf32, #tpu.memory_space<vmem>>, vector<64x256xf32>
    %cst_49 = arith.constant dense<0.000000e+00> : vector<16x256xf32>
    %127 = tpu.matmul %125, %126, %cst_49 {dimension_numbers = #tpu.dot_dimension_numbers<[1], [0], [0], [1], [0, 0, 1, 1], [], []>} : vector<16x64xf32>, vector<64x256xf32>, vector<16x256xf32> -> vector<16x256xf32>
    %128 = vector.extract_strided_slice %127 {offsets = [0, 0], sizes = [16, 128], strides = [1, 1]} : vector<16x256xf32> to vector<16x128xf32>
    %129 = vector.extract_strided_slice %127 {offsets = [0, 128], sizes = [16, 128], strides = [1, 1]} : vector<16x256xf32> to vector<16x128xf32>
    %130 = arith.negf %128 : vector<16x128xf32>
    %131 = math.exp %130 : vector<16x128xf32>
    %cst_50 = arith.constant 1.000000e+00 : f32
    %132 = vector.broadcast %cst_50 : f32 to vector<16x128xf32>
    %133 = arith.addf %132, %131 : vector<16x128xf32>
    %134 = arith.divf %132, %133 : vector<16x128xf32>
    %135 = arith.mulf %128, %134 : vector<16x128xf32>
    %136 = arith.mulf %135, %129 : vector<16x128xf32>
    %c0_51 = arith.constant 0 : index
    %c0_52 = arith.constant 0 : index
    %137 = vector.load %arg7[%c0_51, %c0_52] : memref<128x64xf32, #tpu.memory_space<vmem>>, vector<128x64xf32>
    %cst_53 = arith.constant dense<0.000000e+00> : vector<16x64xf32>
    %138 = tpu.matmul %136, %137, %cst_53 {dimension_numbers = #tpu.dot_dimension_numbers<[1], [0], [0], [1], [0, 0, 1, 1], [], []>} : vector<16x128xf32>, vector<128x64xf32>, vector<16x64xf32> -> vector<16x64xf32>
    %139 = arith.addf %112, %138 : vector<16x64xf32>
    %c0_54 = arith.constant 0 : index
    %c0_55 = arith.constant 0 : index
    %140 = vector.load %arg12[%c0_54, %c0_55] : memref<16x64xf32, #tpu.memory_space<vmem>>, vector<16x64xf32>
    tpu.vector_store %arg12[%c0_54, %c0_55], %139 {strides = array<i32>} : memref<16x64xf32, #tpu.memory_space<vmem>>, vector<16x64xf32>,
    return
  }
  func.func @transform_0(%arg0: i32) -> (i32, i32) {
    %c0_i32 = arith.constant 0 : i32
    %c0_i32_0 = arith.constant 0 : i32
    %c0_i32_1 = arith.constant 0 : i32
    return %c0_i32, %c0_i32_0 : i32, i32
  }
  func.func @transform_1(%arg0: i32) -> (i32, i32) {
    %c0_i32 = arith.constant 0 : i32
    %c0_i32_0 = arith.constant 0 : i32
    %c0_i32_1 = arith.constant 0 : i32
    return %c0_i32, %c0_i32_0 : i32, i32
  }
  func.func @transform_2(%arg0: i32) -> (i32, i32) {
    %c0_i32 = arith.constant 0 : i32
    %c0_i32_0 = arith.constant 0 : i32
    %c0_i32_1 = arith.constant 0 : i32
    return %c0_i32, %c0_i32_0 : i32, i32
  }
  func.func @transform_3(%arg0: i32) -> (i32, i32) {
    %c0_i32 = arith.constant 0 : i32
    %c0_i32_0 = arith.constant 0 : i32
    %c0_i32_1 = arith.constant 0 : i32
    return %c0_i32, %c0_i32_0 : i32, i32
  }
  func.func @transform_4(%arg0: i32) -> (i32, i32) {
    %c0_i32 = arith.constant 0 : i32
    %c0_i32_0 = arith.constant 0 : i32
    %c0_i32_1 = arith.constant 0 : i32
    return %c0_i32, %c0_i32_0 : i32, i32
  }
  func.func @transform_5(%arg0: i32) -> (i32, i32) {
    %c0_i32 = arith.constant 0 : i32
    %c0_i32_0 = arith.constant 0 : i32
    %c0_i32_1 = arith.constant 0 : i32
    return %c0_i32, %c0_i32_0 : i32, i32
  }
  func.func @transform_6(%arg0: i32) -> (i32, i32) {
    %c0_i32 = arith.constant 0 : i32
    %c0_i32_0 = arith.constant 0 : i32
    %c0_i32_1 = arith.constant 0 : i32
    return %c0_i32, %c0_i32_0 : i32, i32
  }
  func.func @transform_7(%arg0: i32) -> (i32, i32) {
    %c0_i32 = arith.constant 0 : i32
    %c0_i32_0 = arith.constant 0 : i32
    %c0_i32_1 = arith.constant 0 : i32
    return %c0_i32, %c0_i32_0 : i32, i32
  }
  func.func @transform_8(%arg0: i32) -> (i32, i32) {
    %c0_i32 = arith.constant 0 : i32
    %c0_i32_0 = arith.constant 0 : i32
    %c0_i32_1 = arith.constant 0 : i32
    return %c0_i32, %c0_i32_0 : i32, i32
  }
  func.func @transform_9(%arg0: i32) -> (i32, i32) {
    %c0_i32 = arith.constant 0 : i32
    %c0_i32_0 = arith.constant 0 : i32
    %c0_i32_1 = arith.constant 0 : i32
    return %c0_i32, %c0_i32_0 : i32, i32
  }
  func.func @transform_10(%arg0: i32) -> (i32, i32) {
    %c0_i32 = arith.constant 0 : i32
    %c0_i32_0 = arith.constant 0 : i32
    %c0_i32_1 = arith.constant 0 : i32
    return %c0_i32, %c0_i32_0 : i32, i32
  }
  func.func @transform_11(%arg0: i32) -> (i32, i32) {
    %c0_i32 = arith.constant 0 : i32
    %c0_i32_0 = arith.constant 0 : i32
    %c0_i32_1 = arith.constant 0 : i32
    return %c0_i32, %c0_i32_0 : i32, i32
  }
}

</mosaic_0001>

<llo_original>
// kernel: tpu_custom_call.1
$region0: #{tpu_custom_call.1}
  #allocation0 [shape = 'u32[]', space=smem, size = 0x4, offset = 0x4, fixed_abs, tag = 'smem constant byte address 0x4 - core index']
  #allocation1 [shape = 'u32[144,128]{1,0:T(1,128)}', space=vmem, size = 0x12000, scoped, tag = 'internal scratch']
  %s0 = inlined_call_operand.vmem [shape: f32[16,64], index: 0, kind: input, shape index: {}]
  %s1 = inlined_call_operand.vmem [shape: f32[1,64], index: 1, kind: input, shape index: {}]
  %s2 = inlined_call_operand.vmem [shape: f32[1,64], index: 2, kind: input, shape index: {}]
  %s3 = inlined_call_operand.vmem [shape: f32[64,128], index: 3, kind: input, shape index: {}]
  %s4 = inlined_call_operand.hbm [shape: f32[64,64], index: 4, kind: input, shape index: {}]
  %s5 = inlined_call_operand.vmem [shape: f32[64,256], index: 5, kind: input, shape index: {}]
  %s6 = inlined_call_operand.vmem [shape: f32[128,64], index: 6, kind: input, shape index: {}]
  %s7 = inlined_call_operand.hbm [shape: f32[16,128], index: 7, kind: input, shape index: {}]
  %s8 = inlined_call_operand.hbm [shape: f32[16,128], index: 8, kind: input, shape index: {}]
  %s9 = inlined_call_operand.hbm [shape: f32[128,128], index: 9, kind: input, shape index: {}]
  %s10 = inlined_call_operand.vmem [shape: f32[16,16], index: 10, kind: input, shape index: {}]
  %s11 = inlined_call_operand.hbm [shape: f32[16,64], index: 11, kind: output, shape index: {}]
  %s12 = sld [smem:[#allocation0]]
  $region70: #{tpu_custom_call.1} parent=0
    _
  %s14 = ssub.s32 1, %s12
  %s15 = scalar_select 0, %s14, %s12
  $region1: #{tpu_custom_call.1} parent=0
    #allocation2 [shape = 'u8[32768]{0}', space=vmem, size = 0x8000, scoped, tag = 'input window, operand 4, single buffered']
    #allocation3 [shape = 's32[1]{0}', space=sflag, size = 0x4, scoped, tag = 'scoped memory for tpu_custom_call.1']
    #allocation4 [shape = 's32[1]{0}', space=sflag, size = 0x4, scoped, tag = 'scoped memory for tpu_custom_call.1']
    #allocation5 [shape = 'u8[8192]{0}', space=vmem, size = 0x2000, scoped, tag = 'input window, operand 7, single buffered']
    #allocation6 [shape = 's32[1]{0}', space=sflag, size = 0x4, scoped, tag = 'scoped memory for tpu_custom_call.1']
    #allocation7 [shape = 'u8[8192]{0}', space=vmem, size = 0x2000, scoped, tag = 'input window, operand 8, single buffered']
    #allocation8 [shape = 'u8[65536]{0}', space=vmem, size = 0x10000, scoped, tag = 'input window, operand 9, single buffered']
    #allocation9 [shape = 's32[1]{0}', space=sflag, size = 0x4, scoped, tag = 'scoped memory for tpu_custom_call.1']
    #allocation10 [shape = 'u8[8192]{0}', space=vmem, size = 0x2000, scoped, tag = 'output window, operand 0, single buffered']
    %16 = vsyncpa [#allocation3], 0
    %17 = vsyncpa [#allocation6], 0
    %18 = vsyncpa [#allocation9], 0
    %19 = vsyncpa [#allocation4], 0
    // Predicated region
    $region2: #{tpu_custom_call.1} parent=1 // pred_check
      _
    $region3: #{tpu_custom_call.1} parent=1 // pred_check_branch
      %21 = sbr.rel (0) target = $region5
    $region4: #{tpu_custom_call.1} parent=1 // pred_region
      _
    $region5: #{tpu_custom_call.1} parent=1 // pred_fallthru
      _
    // Predicated region
    $region6: #{tpu_custom_call.1} parent=1 // pred_check
      _
    $region7: #{tpu_custom_call.1} parent=1 // pred_check_branch
      %23 = sbr.rel (0) target = $region9
    $region8: #{tpu_custom_call.1} parent=1 // pred_region
      _
    $region9: #{tpu_custom_call.1} parent=1 // pred_fallthru
      _
    // Predicated region
    $region10: #{tpu_custom_call.1} parent=1 // pred_check
      _
    $region11: #{tpu_custom_call.1} parent=1 // pred_check_branch
      %25 = sbr.rel (0) target = $region13
    $region12: #{tpu_custom_call.1} parent=1 // pred_region
      _
    $region13: #{tpu_custom_call.1} parent=1 // pred_fallthru
      _
    // Predicated region
    $region14: #{tpu_custom_call.1} parent=1 // pred_check
      _
    $region15: #{tpu_custom_call.1} parent=1 // pred_check_branch
      %27 = sbr.rel (0) target = $region17
    $region16: #{tpu_custom_call.1} parent=1 // pred_region
      _
    $region17: #{tpu_custom_call.1} parent=1 // pred_fallthru
      _
    // Predicated region
    $region18: #{tpu_custom_call.1} parent=1 // pred_check
      _
    $region19: #{tpu_custom_call.1} parent=1 // pred_check_branch
      %29 = sbr.rel (0) target = $region21
    $region20: #{tpu_custom_call.1} parent=1 // pred_region
      %s31 = ssub.s32 1024, 1024
      %32 = vsyncadd [#allocation3], %s31
      %s33 = sshll.u32 [#allocation2], 4
      %s34 = int_to_ptr.vmem [resolvable:$true] %s33
      %39 = dma.hbm_to_vmem [thread:$0]  %s4, 1024, %s34, [#allocation3], 128, 128, 8
    $region21: #{tpu_custom_call.1} parent=1 // pred_fallthru
      _
    // Predicated region
    $region22: #{tpu_custom_call.1} parent=1 // pred_check
      _
    $region23: #{tpu_custom_call.1} parent=1 // pred_check_branch
      %41 = sbr.rel (0) target = $region25
    $region24: #{tpu_custom_call.1} parent=1 // pred_region
      _
    $region25: #{tpu_custom_call.1} parent=1 // pred_fallthru
      _
    // Predicated region
    $region26: #{tpu_custom_call.1} parent=1 // pred_check
      _
    $region27: #{tpu_custom_call.1} parent=1 // pred_check_branch
      %43 = sbr.rel (0) target = $region29
    $region28: #{tpu_custom_call.1} parent=1 // pred_region
      _
    $region29: #{tpu_custom_call.1} parent=1 // pred_fallthru
      _
    // Predicated region
    $region30: #{tpu_custom_call.1} parent=1 // pred_check
      _
    $region31: #{tpu_custom_call.1} parent=1 // pred_check_branch
      %45 = sbr.rel (0) target = $region33
    $region32: #{tpu_custom_call.1} parent=1 // pred_region
      %s47 = ssub.s32 256, 256
      %48 = vsyncadd [#allocation6], %s47
      %s49 = sshll.u32 [#allocation5], 4
      %s50 = int_to_ptr.vmem [resolvable:$true] %s49
      %55 = dma.hbm_to_vmem [thread:$0]  %s7, 256, %s50, [#allocation6], 128, 128, 8
    $region33: #{tpu_custom_call.1} parent=1 // pred_fallthru
      _
    // Predicated region
    $region34: #{tpu_custom_call.1} parent=1 // pred_check
      _
    $region35: #{tpu_custom_call.1} parent=1 // pred_check_branch
      %57 = sbr.rel (0) target = $region37
    $region36: #{tpu_custom_call.1} parent=1 // pred_region
      %s59 = ssub.s32 256, 256
      %60 = vsyncadd [#allocation6], %s59
      %s61 = sshll.u32 [#allocation7], 4
      %s62 = int_to_ptr.vmem [resolvable:$true] %s61
      %67 = dma.hbm_to_vmem [thread:$0]  %s8, 256, %s62, [#allocation6], 128, 128, 8
    $region37: #{tpu_custom_call.1} parent=1 // pred_fallthru
      _
    // Predicated region
    $region38: #{tpu_custom_call.1} parent=1 // pred_check
      _
    $region39: #{tpu_custom_call.1} parent=1 // pred_check_branch
      %69 = sbr.rel (0) target = $region41
    $region40: #{tpu_custom_call.1} parent=1 // pred_region
      %s71 = ssub.s32 2048, 2048
      %72 = vsyncadd [#allocation9], %s71
      %s73 = sshll.u32 [#allocation8], 4
      %s74 = int_to_ptr.vmem [resolvable:$true] %s73
      %79 = dma.hbm_to_vmem [thread:$0]  %s9, 2048, %s74, [#allocation9], 128, 128, 8
    $region41: #{tpu_custom_call.1} parent=1 // pred_fallthru
      _
    // Predicated region
    $region42: #{tpu_custom_call.1} parent=1 // pred_check
      _
    $region43: #{tpu_custom_call.1} parent=1 // pred_check_branch
      %81 = sbr.rel (0) target = $region45
    $region44: #{tpu_custom_call.1} parent=1 // pred_region
      _
    $region45: #{tpu_custom_call.1} parent=1 // pred_fallthru
      _
    // Predicated region
    $region46: #{tpu_custom_call.1} parent=1 // pred_check
      _
    $region47: #{tpu_custom_call.1} parent=1 // pred_check_branch
      %83 = sbr.rel (0) target = $region49
    $region48: #{tpu_custom_call.1} parent=1 // pred_region
      %84 = dma.done [#allocation3], 1024
    $region49: #{tpu_custom_call.1} parent=1 // pred_fallthru
      _
    // Predicated region
    $region50: #{tpu_custom_call.1} parent=1 // pred_check
      _
    $region51: #{tpu_custom_call.1} parent=1 // pred_check_branch
      %86 = sbr.rel (0) target = $region53
    $region52: #{tpu_custom_call.1} parent=1 // pred_region
      %87 = dma.done [#allocation6], 256
    $region53: #{tpu_custom_call.1} parent=1 // pred_fallthru
      _
    // Predicated region
    $region54: #{tpu_custom_call.1} parent=1 // pred_check
      _
    $region55: #{tpu_custom_call.1} parent=1 // pred_check_branch
      %89 = sbr.rel (0) target = $region57
    $region56: #{tpu_custom_call.1} parent=1 // pred_region
      %90 = dma.done [#allocation6], 256
    $region57: #{tpu_custom_call.1} parent=1 // pred_fallthru
      _
    // Predicated region
    $region58: #{tpu_custom_call.1} parent=1 // pred_check
      _
    $region59: #{tpu_custom_call.1} parent=1 // pred_check_branch
      %92 = sbr.rel (0) target = $region61
    $region60: #{tpu_custom_call.1} parent=1 // pred_region
      %93 = dma.done [#allocation9], 2048
    $region61: #{tpu_custom_call.1} parent=1 // pred_fallthru
      _
    %v94 = vld [vmem:[%s0] sm:$0xff]
    %v95 = vld [vmem:[%s0 + $0x8] sm:$0xff]
    %v96 = vld [vmem:[%s1] sm:$0x1]
    %v97 = vmul.f32 %v94, %v94
    %v98 = vmul.f32 %v95, %v95
    %vm99 = vcmask 523264
    %v100 = vsel %vm99, %v97, 0.0
    %101 = vadd.xlane.f32.xlu0 %v100
    %v102 = vpop.xlane.xlu0 %101
    %v103 = vsel %vm99, %v98, 0.0
    %104 = vadd.xlane.f32.xlu0 %v103
    %v105 = vpop.xlane.xlu0 %104
    %v106 = vrcp.pop 64.0
    %v107 = vmul.f32 %v102, %v106
    %v108 = vmul.f32 %v105, %v106
    %v109 = vadd.f32 %v107, 1e-05
    %v110 = vadd.f32 %v108, 1e-05
    %v111 = vrsqrt.pop %v109
    %v112 = vrsqrt.pop %v110
    %v113 = vmul.f32 %v94, %v111
    %v114 = vmul.f32 %v95, %v112
    %v116 = vlaneseq
    %v117 = vshrl.u32 %v116, 7
    %v118 = vsub.s32 0, %v117
    %v119 = vrot.slane %v96, %v118
    %v121 = vmul.f32 %v113, %v119
    %v122 = vmul.f32 %v114, %v119
    %v123 = vld [vmem:[%s3] sm:$0xff]
    %v124 = vld [vmem:[%s3 + $0x8] sm:$0xff]
    %v125 = vld [vmem:[%s3 + $0x10] sm:$0xff]
    %v126 = vld [vmem:[%s3 + $0x18] sm:$0xff]
    %v127 = vld [vmem:[%s3 + $0x20] sm:$0xff]
    %v128 = vld [vmem:[%s3 + $0x28] sm:$0xff]
    %v129 = vld [vmem:[%s3 + $0x30] sm:$0xff]
    %v130 = vld [vmem:[%s3 + $0x38] sm:$0xff]
    %v132 = vsel %vm99, %v121, 0
    %v135 = vsel %vm99, %v122, 0
    %137 = vmatprep.subr.mxu0 0.0
    %138 = vmatpush1.msra.mxu0 %v123
    %139 = vmatprep.subr.mxu0 0.0
    %140 = vmatpush1.msra.mxu0 %v124
    %141 = vmatprep.subr.mxu0 0.0
    %142 = vmatpush1.msra.mxu0 %v125
    %143 = vmatprep.subr.mxu0 0.0
    %144 = vmatpush1.msra.mxu0 %v126
    %145 = vmatprep.subr.mxu0 0.0
    %146 = vmatpush1.msra.mxu0 %v127
    %147 = vmatprep.subr.mxu0 0.0
    %148 = vmatpush1.msra.mxu0 %v128
    %149 = vmatprep.subr.mxu0 0.0
    %150 = vmatpush1.msra.mxu0 %v129
    %151 = vmatprep.subr.mxu0 0.0
    %152 = vmatpush1.msra.mxu0 %v130
    %153 = vmatprep.subr.mxu0 0.0
    %154 = vmatpush1.msra.mxu0 0.0
    %155 = vmatprep.subr.mxu0 0.0
    %156 = vmatpush1.msra.mxu0 0.0
    %157 = vmatprep.subr.mxu0 0.0
    %158 = vmatpush1.msra.mxu0 0.0
    %159 = vmatprep.subr.mxu0 0.0
    %160 = vmatpush1.msra.mxu0 0.0
    %161 = vmatprep.subr.mxu0 0.0
    %162 = vmatpush1.msra.mxu0 0.0
    %163 = vmatprep.subr.mxu0 0.0
    %164 = vmatpush1.msra.mxu0 0.0
    %165 = vmatprep.subr.mxu0 0.0
    %166 = vmatpush1.msra.mxu0 0.0
    %167 = vmatprep.subr.mxu0 0.0
    %168 = vmatpush1.msra.mxu0 0.0
    %169 = vmatprep.subr.mxu0 0.0
    %170 = vmatpush1.msra.mxu0 0.0
    %171 = vmatprep.subr.mxu0 0.0
    %172 = vmatpush1.msra.mxu0 0.0
    %173 = vmatprep.subr.mxu0 0.0
    %174 = vmatpush1.msra.mxu0 0.0
    %175 = vmatprep.subr.mxu0 0.0
    %176 = vmatpush1.msra.mxu0 0.0
    %177 = vmatprep.subr.mxu0 0.0
    %178 = vmatpush1.msra.mxu0 0.0
    %179 = vmatprep.subr.mxu0 0.0
    %180 = vmatpush1.msra.mxu0 0.0
    %181 = vmatprep.subr.mxu0 0.0
    %182 = vmatpush1.msra.mxu0 0.0
    %183 = vmatprep.subr.mxu0 0.0
    %184 = vmatpush1.msra.mxu0 0.0
    %185 = vmatprep.subr.mxu0 0.0
    %186 = vmatpush1.msra.mxu0 0.0
    %187 = vmatprep.subr.mxu0 0.0
    %188 = vmatpush1.msra.mxu0 0.0
    %189 = vmatprep.subr.mxu0 0.0
    %190 = vmatpush1.msra.mxu0 0.0
    %191 = vmatprep.subr.mxu0 0.0
    %192 = vmatpush1.msra.mxu0 0.0
    %193 = vmatprep.subr.mxu0 0.0
    %194 = vmatpush1.msra.mxu0 0.0
    %195 = vmatprep.subr.mxu0 0.0
    %196 = vmatpush1.msra.mxu0 0.0
    %197 = vmatprep.subr.mxu0 0.0
    %198 = vmatpush1.msra.mxu0 0.0
    %199 = vmatprep.subr.mxu0 0.0
    %200 = vmatpush1.msra.mxu0 0.0
    %201 = vmatprep.mubr.f32.mxu0 0.0
    %202 = vmatmul.mubr.f32.gmra.mrb[0].mxu0 %v132
    %v203 = vpop.f32.mrb[0].mxu0
    %v204 = vadd.f32 0.0, %v203
    %v205 = vpop.f32.mrb[0].mxu0
    %206 = vmatprep.mubr.f32.mxu0 0.0
    %207 = vmatmul.mubr.f32.gmra.mrb[0].mxu0 %v135
    %v208 = vpop.f32.mrb[0].mxu0
    %v209 = vadd.f32 0.0, %v208
    %v210 = vpop.f32.mrb[0].mxu0
    %211 = vdwg.mxu0
    %v212 = vld [vmem:[#allocation5] sm:$0xff]
    %v213 = vld [vmem:[#allocation5 + $0x8] sm:$0xff]
    %v214 = vmul.f32 %v204, %v212
    %v215 = vmul.f32 %v209, %v213
    %v216 = vld [vmem:[#allocation8] sm:$0xff]
    %v217 = vld [vmem:[#allocation8 + $0x8] sm:$0xff]
    %v218 = vld [vmem:[#allocation8 + $0x10] sm:$0xff]
    %v219 = vld [vmem:[#allocation8 + $0x18] sm:$0xff]
    %v220 = vld [vmem:[#allocation8 + $0x20] sm:$0xff]
    %v221 = vld [vmem:[#allocation8 + $0x28] sm:$0xff]
    %v222 = vld [vmem:[#allocation8 + $0x30] sm:$0xff]
    %v223 = vld [vmem:[#allocation8 + $0x38] sm:$0xff]
    %v224 = vld [vmem:[#allocation8 + $0x40] sm:$0xff]
    %v225 = vld [vmem:[#allocation8 + $0x48] sm:$0xff]
    %v226 = vld [vmem:[#allocation8 + $0x50] sm:$0xff]
    %v227 = vld [vmem:[#allocation8 + $0x58] sm:$0xff]
    %v228 = vld [vmem:[#allocation8 + $0x60] sm:$0xff]
    %v229 = vld [vmem:[#allocation8 + $0x68] sm:$0xff]
    %v230 = vld [vmem:[#allocation8 + $0x70] sm:$0xff]
    %v231 = vld [vmem:[#allocation8 + $0x78] sm:$0xff]
    %232 = vmatprep.subr.mxu0 0.0
    %233 = vmatpush1.msra.mxu0 %v216
    %234 = vmatprep.subr.mxu0 0.0
    %235 = vmatpush1.msra.mxu0 %v217
    %236 = vmatprep.subr.mxu0 0.0
    %237 = vmatpush1.msra.mxu0 %v218
    %238 = vmatprep.subr.mxu0 0.0
    %239 = vmatpush1.msra.mxu0 %v219
    %240 = vmatprep.subr.mxu0 0.0
    %241 = vmatpush1.msra.mxu0 %v220
    %242 = vmatprep.subr.mxu0 0.0
    %243 = vmatpush1.msra.mxu0 %v221
    %244 = vmatprep.subr.mxu0 0.0
    %245 = vmatpush1.msra.mxu0 %v222
    %246 = vmatprep.subr.mxu0 0.0
    %247 = vmatpush1.msra.mxu0 %v223
    %248 = vmatprep.subr.mxu0 0.0
    %249 = vmatpush1.msra.mxu0 %v224
    %250 = vmatprep.subr.mxu0 0.0
    %251 = vmatpush1.msra.mxu0 %v225
    %252 = vmatprep.subr.mxu0 0.0
    %253 = vmatpush1.msra.mxu0 %v226
    %254 = vmatprep.subr.mxu0 0.0
    %255 = vmatpush1.msra.mxu0 %v227
    %256 = vmatprep.subr.mxu0 0.0
    %257 = vmatpush1.msra.mxu0 %v228
    %258 = vmatprep.subr.mxu0 0.0
    %259 = vmatpush1.msra.mxu0 %v229
    %260 = vmatprep.subr.mxu0 0.0
    %261 = vmatpush1.msra.mxu0 %v230
    %262 = vmatprep.subr.mxu0 0.0
    %263 = vmatpush1.msra.mxu0 %v231
    %264 = vmatprep.subr.mxu0 0.0
    %265 = vmatpush1.msra.mxu0 0.0
    %266 = vmatprep.subr.mxu0 0.0
    %267 = vmatpush1.msra.mxu0 0.0
    %268 = vmatprep.subr.mxu0 0.0
    %269 = vmatpush1.msra.mxu0 0.0
    %270 = vmatprep.subr.mxu0 0.0
    %271 = vmatpush1.msra.mxu0 0.0
    %272 = vmatprep.subr.mxu0 0.0
    %273 = vmatpush1.msra.mxu0 0.0
    %274 = vmatprep.subr.mxu0 0.0
    %275 = vmatpush1.msra.mxu0 0.0
    %276 = vmatprep.subr.mxu0 0.0
    %277 = vmatpush1.msra.mxu0 0.0
    %278 = vmatprep.subr.mxu0 0.0
    %279 = vmatpush1.msra.mxu0 0.0
    %280 = vmatprep.subr.mxu0 0.0
    %281 = vmatpush1.msra.mxu0 0.0
    %282 = vmatprep.subr.mxu0 0.0
    %283 = vmatpush1.msra.mxu0 0.0
    %284 = vmatprep.subr.mxu0 0.0
    %285 = vmatpush1.msra.mxu0 0.0
    %286 = vmatprep.subr.mxu0 0.0
    %287 = vmatpush1.msra.mxu0 0.0
    %288 = vmatprep.subr.mxu0 0.0
    %289 = vmatpush1.msra.mxu0 0.0
    %290 = vmatprep.subr.mxu0 0.0
    %291 = vmatpush1.msra.mxu0 0.0
    %292 = vmatprep.subr.mxu0 0.0
    %293 = vmatpush1.msra.mxu0 0.0
    %294 = vmatprep.subr.mxu0 0.0
    %295 = vmatpush1.msra.mxu0 0.0
    %296 = vmatprep.mubr.f32.mxu0 0.0
    %297 = vmatmul.mubr.f32.gmra.mrb[0].mxu0 %v204
    %v298 = vpop.f32.mrb[0].mxu0
    %v299 = vadd.f32 0.0, %v298
    %v300 = vpop.f32.mrb[0].mxu0
    %301 = vmatprep.mubr.f32.mxu0 0.0
    %302 = vmatmul.mubr.f32.gmra.mrb[0].mxu0 %v209
    %v303 = vpop.f32.mrb[0].mxu0
    %v304 = vadd.f32 0.0, %v303
    %v305 = vpop.f32.mrb[0].mxu0
    %306 = vdwg.mxu0
    %v307 = vld [vmem:[#allocation7] sm:$0xff]
    %v308 = vld [vmem:[#allocation7 + $0x8] sm:$0xff]
    %v309 = vmul.f32 %v299, %v307
    %v310 = vmul.f32 %v304, %v308
    %v311 = vadd.f32 %v214, %v309
    %v312 = vadd.f32 %v215, %v310
    %v313 = vld [vmem:[%s10] sm:$0xff]
    %v314 = vld [vmem:[%s10 + $0x8] sm:$0xff]
    %v315 = vld [vmem:[#allocation2] sm:$0xff]
    %v316 = vld [vmem:[#allocation2 + $0x8] sm:$0xff]
    %v317 = vld [vmem:[#allocation2 + $0x10] sm:$0xff]
    %v318 = vld [vmem:[#allocation2 + $0x18] sm:$0xff]
    %v319 = vld [vmem:[#allocation2 + $0x20] sm:$0xff]
    %v320 = vld [vmem:[#allocation2 + $0x28] sm:$0xff]
    %v321 = vld [vmem:[#allocation2 + $0x30] sm:$0xff]
    %v322 = vld [vmem:[#allocation2 + $0x38] sm:$0xff]
    %325 = vrot.lane.b32.xlu0 %v311, 64
    %v326 = vpop.permute.xlu0 %325
    %327 = vrot.lane.b32.xlu0 %v312, 64
    %v328 = vpop.permute.xlu0 %327
    %vm329 = vcmask 130048
    %v330 = vsel %vm329, %v311, 0
    %v332 = vsel %vm329, %v312, 0
    %v334 = vsel %vm329, %v326, 0
    %v336 = vsel %vm329, %v328, 0
    %338 = vmatprep.subr.mxu0 0.0
    %339 = vmatpush1.xpose.msra.mxu0 %v334
    %340 = vmatprep.subr.mxu0 0.0
    %341 = vmatpush1.xpose.msra.mxu0 %v336
    %342 = vmatprep.subr.mxu0 0.0
    %343 = vmatpush1.xpose.msra.mxu0 0.0
    %344 = vmatprep.subr.mxu0 0.0
    %345 = vmatpush1.xpose.msra.mxu0 0.0
    %346 = vmatprep.subr.mxu0 0.0
    %347 = vmatpush1.xpose.msra.mxu0 0.0
    %348 = vmatprep.subr.mxu0 0.0
    %349 = vmatpush1.xpose.msra.mxu0 0.0
    %350 = vmatprep.subr.mxu0 0.0
    %351 = vmatpush1.xpose.msra.mxu0 0.0
    %352 = vmatprep.subr.mxu0 0.0
    %353 = vmatpush1.xpose.msra.mxu0 0.0
    %354 = vmatprep.subr.mxu0 0.0
    %355 = vmatpush1.xpose.msra.mxu0 0.0
    %356 = vmatprep.subr.mxu0 0.0
    %357 = vmatpush1.xpose.msra.mxu0 0.0
    %358 = vmatprep.subr.mxu0 0.0
    %359 = vmatpush1.xpose.msra.mxu0 0.0
    %360 = vmatprep.subr.mxu0 0.0
    %361 = vmatpush1.xpose.msra.mxu0 0.0
    %362 = vmatprep.subr.mxu0 0.0
    %363 = vmatpush1.xpose.msra.mxu0 0.0
    %364 = vmatprep.subr.mxu0 0.0
    %365 = vmatpush1.xpose.msra.mxu0 0.0
    %366 = vmatprep.subr.mxu0 0.0
    %367 = vmatpush1.xpose.msra.mxu0 0.0
    %368 = vmatprep.subr.mxu0 0.0
    %369 = vmatpush1.xpose.msra.mxu0 0.0
    %370 = vmatprep.subr.mxu0 0.0
    %371 = vmatpush1.xpose.msra.mxu0 0.0
    %372 = vmatprep.subr.mxu0 0.0
    %373 = vmatpush1.xpose.msra.mxu0 0.0
    %374 = vmatprep.subr.mxu0 0.0
    %375 = vmatpush1.xpose.msra.mxu0 0.0
    %376 = vmatprep.subr.mxu0 0.0
    %377 = vmatpush1.xpose.msra.mxu0 0.0
    %378 = vmatprep.subr.mxu0 0.0
    %379 = vmatpush1.xpose.msra.mxu0 0.0
    %380 = vmatprep.subr.mxu0 0.0
    %381 = vmatpush1.xpose.msra.mxu0 0.0
    %382 = vmatprep.subr.mxu0 0.0
    %383 = vmatpush1.xpose.msra.mxu0 0.0
    %384 = vmatprep.subr.mxu0 0.0
    %385 = vmatpush1.xpose.msra.mxu0 0.0
    %386 = vmatprep.subr.mxu0 0.0
    %387 = vmatpush1.xpose.msra.mxu0 0.0
    %388 = vmatprep.subr.mxu0 0.0
    %389 = vmatpush1.xpose.msra.mxu0 0.0
    %390 = vmatprep.subr.mxu0 0.0
    %391 = vmatpush1.xpose.msra.mxu0 0.0
    %392 = vmatprep.subr.mxu0 0.0
    %393 = vmatpush1.xpose.msra.mxu0 0.0
    %394 = vmatprep.subr.mxu0 0.0
    %395 = vmatpush1.xpose.msra.mxu0 0.0
    %396 = vmatprep.subr.mxu0 0.0
    %397 = vmatpush1.xpose.msra.mxu0 0.0
    %398 = vmatprep.subr.mxu0 0.0
    %399 = vmatpush1.xpose.msra.mxu0 0.0
    %400 = vmatprep.subr.mxu0 0.0
    %401 = vmatpush1.xpose.msra.mxu0 0.0
    %402 = vmatprep.mubr.f32.mxu0 0.0
    %403 = vmatmul.mubr.f32.gmra.mrb[0].mxu0 %v330
    %v404 = vpop.f32.mrb[0].mxu0
    %v405 = vadd.f32 0.0, %v404
    %v406 = vpop.f32.mrb[0].mxu0
    %407 = vmatprep.mubr.f32.mxu0 0.0
    %408 = vmatmul.mubr.f32.gmra.mrb[0].mxu0 %v332
    %v409 = vpop.f32.mrb[0].mxu0
    %v410 = vadd.f32 0.0, %v409
    %v411 = vpop.f32.mrb[0].mxu0
    %412 = vdwg.mxu0
    %v413 = vmul.f32 %v405, 0.25
    %v414 = vmul.f32 %v410, 0.25
    %v415 = vadd.f32 %v413, %v313
    %v416 = vadd.f32 %v414, %v314
    %v417 = vsel %vm329, %v415, -inf
    %418 = vmax.xlane.f32.xlu0 %v417
    %v419 = vpop.xlane.xlu0 %418
    %v420 = vsel %vm329, %v416, -inf
    %421 = vmax.xlane.f32.xlu0 %v420
    %v422 = vpop.xlane.xlu0 %421
    %v423 = vsub.f32 %v415, %v419
    %v424 = vsub.f32 %v416, %v422
    %v425 = vmul.f32 %v423, 1.442695
    %v426 = vpow.pop %v425
    %v427 = vmul.f32 %v424, 1.442695
    %v428 = vpow.pop %v427
    %v429 = vsel %vm329, %v426, 0.0
    %430 = vadd.xlane.f32.xlu0 %v429
    %v431 = vpop.xlane.xlu0 %430
    %v432 = vsel %vm329, %v428, 0.0
    %433 = vadd.xlane.f32.xlu0 %v432
    %v434 = vpop.xlane.xlu0 %433
    %v435 = vrcp.pop %v431
    %v436 = vrcp.pop %v434
    %v437 = vmul.f32 %v426, %v435
    %v438 = vmul.f32 %v428, %v436
    %439 = vrot.lane.b32.xlu0 %v311, 32
    %v440 = vpop.permute.xlu0 %439
    %441 = vrot.lane.b32.xlu0 %v312, 32
    %v442 = vpop.permute.xlu0 %441
    %v446 = vsel %vm329, %v437, 0
    %v449 = vsel %vm329, %v438, 0
    %451 = vmatprep.subr.mxu0 0.0
    %452 = vmatpush1.msra.mxu0 %v440
    %453 = vmatprep.subr.mxu0 0.0
    %454 = vmatpush1.msra.mxu0 %v442
    %455 = vmatprep.subr.mxu0 0.0
    %456 = vmatpush1.msra.mxu0 0.0
    %457 = vmatprep.subr.mxu0 0.0
    %458 = vmatpush1.msra.mxu0 0.0
    %459 = vmatprep.subr.mxu0 0.0
    %460 = vmatpush1.msra.mxu0 0.0
    %461 = vmatprep.subr.mxu0 0.0
    %462 = vmatpush1.msra.mxu0 0.0
    %463 = vmatprep.subr.mxu0 0.0
    %464 = vmatpush1.msra.mxu0 0.0
    %465 = vmatprep.subr.mxu0 0.0
    %466 = vmatpush1.msra.mxu0 0.0
    %467 = vmatprep.subr.mxu0 0.0
    %468 = vmatpush1.msra.mxu0 0.0
    %469 = vmatprep.subr.mxu0 0.0
    %470 = vmatpush1.msra.mxu0 0.0
    %471 = vmatprep.subr.mxu0 0.0
    %472 = vmatpush1.msra.mxu0 0.0
    %473 = vmatprep.subr.mxu0 0.0
    %474 = vmatpush1.msra.mxu0 0.0
    %475 = vmatprep.subr.mxu0 0.0
    %476 = vmatpush1.msra.mxu0 0.0
    %477 = vmatprep.subr.mxu0 0.0
    %478 = vmatpush1.msra.mxu0 0.0
    %479 = vmatprep.subr.mxu0 0.0
    %480 = vmatpush1.msra.mxu0 0.0
    %481 = vmatprep.subr.mxu0 0.0
    %482 = vmatpush1.msra.mxu0 0.0
    %483 = vmatprep.subr.mxu0 0.0
    %484 = vmatpush1.msra.mxu0 0.0
    %485 = vmatprep.subr.mxu0 0.0
    %486 = vmatpush1.msra.mxu0 0.0
    %487 = vmatprep.subr.mxu0 0.0
    %488 = vmatpush1.msra.mxu0 0.0
    %489 = vmatprep.subr.mxu0 0.0
    %490 = vmatpush1.msra.mxu0 0.0
    %491 = vmatprep.subr.mxu0 0.0
    %492 = vmatpush1.msra.mxu0 0.0
    %493 = vmatprep.subr.mxu0 0.0
    %494 = vmatpush1.msra.mxu0 0.0
    %495 = vmatprep.subr.mxu0 0.0
    %496 = vmatpush1.msra.mxu0 0.0
    %497 = vmatprep.subr.mxu0 0.0
    %498 = vmatpush1.msra.mxu0 0.0
    %499 = vmatprep.subr.mxu0 0.0
    %500 = vmatpush1.msra.mxu0 0.0
    %501 = vmatprep.subr.mxu0 0.0
    %502 = vmatpush1.msra.mxu0 0.0
    %503 = vmatprep.subr.mxu0 0.0
    %504 = vmatpush1.msra.mxu0 0.0
    %505 = vmatprep.subr.mxu0 0.0
    %506 = vmatpush1.msra.mxu0 0.0
    %507 = vmatprep.subr.mxu0 0.0
    %508 = vmatpush1.msra.mxu0 0.0
    %509 = vmatprep.subr.mxu0 0.0
    %510 = vmatpush1.msra.mxu0 0.0
    %511 = vmatprep.subr.mxu0 0.0
    %512 = vmatpush1.msra.mxu0 0.0
    %513 = vmatprep.subr.mxu0 0.0
    %514 = vmatpush1.msra.mxu0 0.0
    %515 = vmatprep.mubr.f32.mxu0 0.0
    %516 = vmatmul.mubr.f32.gmra.mrb[0].mxu0 %v446
    %v517 = vpop.f32.mrb[0].mxu0
    %v518 = vadd.f32 0.0, %v517
    %v519 = vpop.f32.mrb[0].mxu0
    %520 = vmatprep.mubr.f32.mxu0 0.0
    %521 = vmatmul.mubr.f32.gmra.mrb[0].mxu0 %v449
    %v522 = vpop.f32.mrb[0].mxu0
    %v523 = vadd.f32 0.0, %v522
    %v524 = vpop.f32.mrb[0].mxu0
    %525 = vdwg.mxu0
    %526 = vrot.lane.b32.xlu0 %v311, 112
    %v527 = vpop.permute.xlu0 %526
    %528 = vrot.lane.b32.xlu0 %v312, 112
    %v529 = vpop.permute.xlu0 %528
    %v530 = vsel %vm329, %v527, 0
    %v532 = vsel %vm329, %v529, 0
    %534 = vmatprep.subr.mxu0 0.0
    %535 = vmatpush1.xpose.msra.mxu0 %v334
    %536 = vmatprep.subr.mxu0 0.0
    %537 = vmatpush1.xpose.msra.mxu0 %v336
    %538 = vmatprep.subr.mxu0 0.0
    %539 = vmatpush1.xpose.msra.mxu0 0.0
    %540 = vmatprep.subr.mxu0 0.0
    %541 = vmatpush1.xpose.msra.mxu0 0.0
    %542 = vmatprep.subr.mxu0 0.0
    %543 = vmatpush1.xpose.msra.mxu0 0.0
    %544 = vmatprep.subr.mxu0 0.0
    %545 = vmatpush1.xpose.msra.mxu0 0.0
    %546 = vmatprep.subr.mxu0 0.0
    %547 = vmatpush1.xpose.msra.mxu0 0.0
    %548 = vmatprep.subr.mxu0 0.0
    %549 = vmatpush1.xpose.msra.mxu0 0.0
    %550 = vmatprep.subr.mxu0 0.0
    %551 = vmatpush1.xpose.msra.mxu0 0.0
    %552 = vmatprep.subr.mxu0 0.0
    %553 = vmatpush1.xpose.msra.mxu0 0.0
    %554 = vmatprep.subr.mxu0 0.0
    %555 = vmatpush1.xpose.msra.mxu0 0.0
    %556 = vmatprep.subr.mxu0 0.0
    %557 = vmatpush1.xpose.msra.mxu0 0.0
    %558 = vmatprep.subr.mxu0 0.0
    %559 = vmatpush1.xpose.msra.mxu0 0.0
    %560 = vmatprep.subr.mxu0 0.0
    %561 = vmatpush1.xpose.msra.mxu0 0.0
    %562 = vmatprep.subr.mxu0 0.0
    %563 = vmatpush1.xpose.msra.mxu0 0.0
    %564 = vmatprep.subr.mxu0 0.0
    %565 = vmatpush1.xpose.msra.mxu0 0.0
    %566 = vmatprep.subr.mxu0 0.0
    %567 = vmatpush1.xpose.msra.mxu0 0.0
    %568 = vmatprep.subr.mxu0 0.0
    %569 = vmatpush1.xpose.msra.mxu0 0.0
    %570 = vmatprep.subr.mxu0 0.0
    %571 = vmatpush1.xpose.msra.mxu0 0.0
    %572 = vmatprep.subr.mxu0 0.0
    %573 = vmatpush1.xpose.msra.mxu0 0.0
    %574 = vmatprep.subr.mxu0 0.0
    %575 = vmatpush1.xpose.msra.mxu0 0.0
    %576 = vmatprep.subr.mxu0 0.0
    %577 = vmatpush1.xpose.msra.mxu0 0.0
    %578 = vmatprep.subr.mxu0 0.0
    %579 = vmatpush1.xpose.msra.mxu0 0.0
    %580 = vmatprep.subr.mxu0 0.0
    %581 = vmatpush1.xpose.msra.mxu0 0.0
    %582 = vmatprep.subr.mxu0 0.0
    %583 = vmatpush1.xpose.msra.mxu0 0.0
    %584 = vmatprep.subr.mxu0 0.0
    %585 = vmatpush1.xpose.msra.mxu0 0.0
    %586 = vmatprep.subr.mxu0 0.0
    %587 = vmatpush1.xpose.msra.mxu0 0.0
    %588 = vmatprep.subr.mxu0 0.0
    %589 = vmatpush1.xpose.msra.mxu0 0.0
    %590 = vmatprep.subr.mxu0 0.0
    %591 = vmatpush1.xpose.msra.mxu0 0.0
    %592 = vmatprep.subr.mxu0 0.0
    %593 = vmatpush1.xpose.msra.mxu0 0.0
    %594 = vmatprep.subr.mxu0 0.0
    %595 = vmatpush1.xpose.msra.mxu0 0.0
    %596 = vmatprep.subr.mxu0 0.0
    %597 = vmatpush1.xpose.msra.mxu0 0.0
    %598 = vmatprep.mubr.f32.mxu0 0.0
    %599 = vmatmul.mubr.f32.gmra.mrb[0].mxu0 %v530
    %v600 = vpop.f32.mrb[0].mxu0
    %v601 = vadd.f32 0.0, %v600
    %v602 = vpop.f32.mrb[0].mxu0
    %603 = vmatprep.mubr.f32.mxu0 0.0
    %604 = vmatmul.mubr.f32.gmra.mrb[0].mxu0 %v532
    %v605 = vpop.f32.mrb[0].mxu0
    %v606 = vadd.f32 0.0, %v605
    %v607 = vpop.f32.mrb[0].mxu0
    %608 = vdwg.mxu0
    %v609 = vmul.f32 %v601, 0.25
    %v610 = vmul.f32 %v606, 0.25
    %v611 = vadd.f32 %v609, %v313
    %v612 = vadd.f32 %v610, %v314
    %v613 = vsel %vm329, %v611, -inf
    %614 = vmax.xlane.f32.xlu0 %v613
    %v615 = vpop.xlane.xlu0 %614
    %v616 = vsel %vm329, %v612, -inf
    %617 = vmax.xlane.f32.xlu0 %v616
    %v618 = vpop.xlane.xlu0 %617
    %v619 = vsub.f32 %v611, %v615
    %v620 = vsub.f32 %v612, %v618
    %v621 = vmul.f32 %v619, 1.442695
    %v622 = vpow.pop %v621
    %v623 = vmul.f32 %v620, 1.442695
    %v624 = vpow.pop %v623
    %v625 = vsel %vm329, %v622, 0.0
    %626 = vadd.xlane.f32.xlu0 %v625
    %v627 = vpop.xlane.xlu0 %626
    %v628 = vsel %vm329, %v624, 0.0
    %629 = vadd.xlane.f32.xlu0 %v628
    %v630 = vpop.xlane.xlu0 %629
    %v631 = vrcp.pop %v627
    %v632 = vrcp.pop %v630
    %v633 = vmul.f32 %v622, %v631
    %v634 = vmul.f32 %v624, %v632
    %v636 = vsel %vm329, %v633, 0
    %v639 = vsel %vm329, %v634, 0
    %641 = vmatprep.subr.mxu0 0.0
    %642 = vmatpush1.msra.mxu0 %v440
    %643 = vmatprep.subr.mxu0 0.0
    %644 = vmatpush1.msra.mxu0 %v442
    %645 = vmatprep.subr.mxu0 0.0
    %646 = vmatpush1.msra.mxu0 0.0
    %647 = vmatprep.subr.mxu0 0.0
    %648 = vmatpush1.msra.mxu0 0.0
    %649 = vmatprep.subr.mxu0 0.0
    %650 = vmatpush1.msra.mxu0 0.0
    %651 = vmatprep.subr.mxu0 0.0
    %652 = vmatpush1.msra.mxu0 0.0
    %653 = vmatprep.subr.mxu0 0.0
    %654 = vmatpush1.msra.mxu0 0.0
    %655 = vmatprep.subr.mxu0 0.0
    %656 = vmatpush1.msra.mxu0 0.0
    %657 = vmatprep.subr.mxu0 0.0
    %658 = vmatpush1.msra.mxu0 0.0
    %659 = vmatprep.subr.mxu0 0.0
    %660 = vmatpush1.msra.mxu0 0.0
    %661 = vmatprep.subr.mxu0 0.0
    %662 = vmatpush1.msra.mxu0 0.0
    %663 = vmatprep.subr.mxu0 0.0
    %664 = vmatpush1.msra.mxu0 0.0
    %665 = vmatprep.subr.mxu0 0.0
    %666 = vmatpush1.msra.mxu0 0.0
    %667 = vmatprep.subr.mxu0 0.0
    %668 = vmatpush1.msra.mxu0 0.0
    %669 = vmatprep.subr.mxu0 0.0
    %670 = vmatpush1.msra.mxu0 0.0
    %671 = vmatprep.subr.mxu0 0.0
    %672 = vmatpush1.msra.mxu0 0.0
    %673 = vmatprep.subr.mxu0 0.0
    %674 = vmatpush1.msra.mxu0 0.0
    %675 = vmatprep.subr.mxu0 0.0
    %676 = vmatpush1.msra.mxu0 0.0
    %677 = vmatprep.subr.mxu0 0.0
    %678 = vmatpush1.msra.mxu0 0.0
    %679 = vmatprep.subr.mxu0 0.0
    %680 = vmatpush1.msra.mxu0 0.0
    %681 = vmatprep.subr.mxu0 0.0
    %682 = vmatpush1.msra.mxu0 0.0
    %683 = vmatprep.subr.mxu0 0.0
    %684 = vmatpush1.msra.mxu0 0.0
    %685 = vmatprep.subr.mxu0 0.0
    %686 = vmatpush1.msra.mxu0 0.0
    %687 = vmatprep.subr.mxu0 0.0
    %688 = vmatpush1.msra.mxu0 0.0
    %689 = vmatprep.subr.mxu0 0.0
    %690 = vmatpush1.msra.mxu0 0.0
    %691 = vmatprep.subr.mxu0 0.0
    %692 = vmatpush1.msra.mxu0 0.0
    %693 = vmatprep.subr.mxu0 0.0
    %694 = vmatpush1.msra.mxu0 0.0
    %695 = vmatprep.subr.mxu0 0.0
    %696 = vmatpush1.msra.mxu0 0.0
    %697 = vmatprep.subr.mxu0 0.0
    %698 = vmatpush1.msra.mxu0 0.0
    %699 = vmatprep.subr.mxu0 0.0
    %700 = vmatpush1.msra.mxu0 0.0
    %701 = vmatprep.subr.mxu0 0.0
    %702 = vmatpush1.msra.mxu0 0.0
    %703 = vmatprep.subr.mxu0 0.0
    %704 = vmatpush1.msra.mxu0 0.0
    %705 = vmatprep.mubr.f32.mxu0 0.0
    %706 = vmatmul.mubr.f32.gmra.mrb[0].mxu0 %v636
    %v707 = vpop.f32.mrb[0].mxu0
    %v708 = vadd.f32 0.0, %v707
    %v709 = vpop.f32.mrb[0].mxu0
    %710 = vmatprep.mubr.f32.mxu0 0.0
    %711 = vmatmul.mubr.f32.gmra.mrb[0].mxu0 %v639
    %v712 = vpop.f32.mrb[0].mxu0
    %v713 = vadd.f32 0.0, %v712
    %v714 = vpop.f32.mrb[0].mxu0
    %715 = vdwg.mxu0
    %v717 = vsel %vm329, %v708, 0
    %v720 = vsel %vm329, %v713, 0
    %722 = vmatprep.subr.mxu0 0.0
    %723 = vmatpush1.msra.mxu0 %v317
    %724 = vmatprep.subr.mxu0 0.0
    %725 = vmatpush1.msra.mxu0 %v318
    %726 = vmatprep.subr.mxu0 0.0
    %727 = vmatpush1.msra.mxu0 0.0
    %728 = vmatprep.subr.mxu0 0.0
    %729 = vmatpush1.msra.mxu0 0.0
    %730 = vmatprep.subr.mxu0 0.0
    %731 = vmatpush1.msra.mxu0 0.0
    %732 = vmatprep.subr.mxu0 0.0
    %733 = vmatpush1.msra.mxu0 0.0
    %734 = vmatprep.subr.mxu0 0.0
    %735 = vmatpush1.msra.mxu0 0.0
    %736 = vmatprep.subr.mxu0 0.0
    %737 = vmatpush1.msra.mxu0 0.0
    %738 = vmatprep.subr.mxu0 0.0
    %739 = vmatpush1.msra.mxu0 0.0
    %740 = vmatprep.subr.mxu0 0.0
    %741 = vmatpush1.msra.mxu0 0.0
    %742 = vmatprep.subr.mxu0 0.0
    %743 = vmatpush1.msra.mxu0 0.0
    %744 = vmatprep.subr.mxu0 0.0
    %745 = vmatpush1.msra.mxu0 0.0
    %746 = vmatprep.subr.mxu0 0.0
    %747 = vmatpush1.msra.mxu0 0.0
    %748 = vmatprep.subr.mxu0 0.0
    %749 = vmatpush1.msra.mxu0 0.0
    %750 = vmatprep.subr.mxu0 0.0
    %751 = vmatpush1.msra.mxu0 0.0
    %752 = vmatprep.subr.mxu0 0.0
    %753 = vmatpush1.msra.mxu0 0.0
    %754 = vmatprep.subr.mxu0 0.0
    %755 = vmatpush1.msra.mxu0 0.0
    %756 = vmatprep.subr.mxu0 0.0
    %757 = vmatpush1.msra.mxu0 0.0
    %758 = vmatprep.subr.mxu0 0.0
    %759 = vmatpush1.msra.mxu0 0.0
    %760 = vmatprep.subr.mxu0 0.0
    %761 = vmatpush1.msra.mxu0 0.0
    %762 = vmatprep.subr.mxu0 0.0
    %763 = vmatpush1.msra.mxu0 0.0
    %764 = vmatprep.subr.mxu0 0.0
    %765 = vmatpush1.msra.mxu0 0.0
    %766 = vmatprep.subr.mxu0 0.0
    %767 = vmatpush1.msra.mxu0 0.0
    %768 = vmatprep.subr.mxu0 0.0
    %769 = vmatpush1.msra.mxu0 0.0
    %770 = vmatprep.subr.mxu0 0.0
    %771 = vmatpush1.msra.mxu0 0.0
    %772 = vmatprep.subr.mxu0 0.0
    %773 = vmatpush1.msra.mxu0 0.0
    %774 = vmatprep.subr.mxu0 0.0
    %775 = vmatpush1.msra.mxu0 0.0
    %776 = vmatprep.subr.mxu0 0.0
    %777 = vmatpush1.msra.mxu0 0.0
    %778 = vmatprep.subr.mxu0 0.0
    %779 = vmatpush1.msra.mxu0 0.0
    %780 = vmatprep.subr.mxu0 0.0
    %781 = vmatpush1.msra.mxu0 0.0
    %782 = vmatprep.subr.mxu0 0.0
    %783 = vmatpush1.msra.mxu0 0.0
    %784 = vmatprep.subr.mxu0 0.0
    %785 = vmatpush1.msra.mxu0 0.0
    %786 = vmatprep.mubr.f32.mxu0 0.0
    %787 = vmatmul.mubr.f32.gmra.mrb[0].mxu0 %v717
    %v788 = vpop.f32.mrb[0].mxu0
    %v789 = vadd.f32 0.0, %v788
    %v790 = vpop.f32.mrb[0].mxu0
    %791 = vmatprep.mubr.f32.mxu0 0.0
    %792 = vmatmul.mubr.f32.gmra.mrb[0].mxu0 %v720
    %v793 = vpop.f32.mrb[0].mxu0
    %v794 = vadd.f32 0.0, %v793
    %v795 = vpop.f32.mrb[0].mxu0
    %796 = vdwg.mxu0
    %v798 = vsel %vm329, %v518, 0
    %v801 = vsel %vm329, %v523, 0
    %803 = vmatprep.subr.mxu0 0.0
    %804 = vmatpush1.msra.mxu0 %v315
    %805 = vmatprep.subr.mxu0 0.0
    %806 = vmatpush1.msra.mxu0 %v316
    %807 = vmatprep.subr.mxu0 0.0
    %808 = vmatpush1.msra.mxu0 0.0
    %809 = vmatprep.subr.mxu0 0.0
    %810 = vmatpush1.msra.mxu0 0.0
    %811 = vmatprep.subr.mxu0 0.0
    %812 = vmatpush1.msra.mxu0 0.0
    %813 = vmatprep.subr.mxu0 0.0
    %814 = vmatpush1.msra.mxu0 0.0
    %815 = vmatprep.subr.mxu0 0.0
    %816 = vmatpush1.msra.mxu0 0.0
    %817 = vmatprep.subr.mxu0 0.0
    %818 = vmatpush1.msra.mxu0 0.0
    %819 = vmatprep.subr.mxu0 0.0
    %820 = vmatpush1.msra.mxu0 0.0
    %821 = vmatprep.subr.mxu0 0.0
    %822 = vmatpush1.msra.mxu0 0.0
    %823 = vmatprep.subr.mxu0 0.0
    %824 = vmatpush1.msra.mxu0 0.0
    %825 = vmatprep.subr.mxu0 0.0
    %826 = vmatpush1.msra.mxu0 0.0
    %827 = vmatprep.subr.mxu0 0.0
    %828 = vmatpush1.msra.mxu0 0.0
    %829 = vmatprep.subr.mxu0 0.0
    %830 = vmatpush1.msra.mxu0 0.0
    %831 = vmatprep.subr.mxu0 0.0
    %832 = vmatpush1.msra.mxu0 0.0
    %833 = vmatprep.subr.mxu0 0.0
    %834 = vmatpush1.msra.mxu0 0.0
    %835 = vmatprep.subr.mxu0 0.0
    %836 = vmatpush1.msra.mxu0 0.0
    %837 = vmatprep.subr.mxu0 0.0
    %838 = vmatpush1.msra.mxu0 0.0
    %839 = vmatprep.subr.mxu0 0.0
    %840 = vmatpush1.msra.mxu0 0.0
    %841 = vmatprep.subr.mxu0 0.0
    %842 = vmatpush1.msra.mxu0 0.0
    %843 = vmatprep.subr.mxu0 0.0
    %844 = vmatpush1.msra.mxu0 0.0
    %845 = vmatprep.subr.mxu0 0.0
    %846 = vmatpush1.msra.mxu0 0.0
    %847 = vmatprep.subr.mxu0 0.0
    %848 = vmatpush1.msra.mxu0 0.0
    %849 = vmatprep.subr.mxu0 0.0
    %850 = vmatpush1.msra.mxu0 0.0
    %851 = vmatprep.subr.mxu0 0.0
    %852 = vmatpush1.msra.mxu0 0.0
    %853 = vmatprep.subr.mxu0 0.0
    %854 = vmatpush1.msra.mxu0 0.0
    %855 = vmatprep.subr.mxu0 0.0
    %856 = vmatpush1.msra.mxu0 0.0
    %857 = vmatprep.subr.mxu0 0.0
    %858 = vmatpush1.msra.mxu0 0.0
    %859 = vmatprep.subr.mxu0 0.0
    %860 = vmatpush1.msra.mxu0 0.0
    %861 = vmatprep.subr.mxu0 0.0
    %862 = vmatpush1.msra.mxu0 0.0
    %863 = vmatprep.subr.mxu0 0.0
    %864 = vmatpush1.msra.mxu0 0.0
    %865 = vmatprep.subr.mxu0 0.0
    %866 = vmatpush1.msra.mxu0 0.0
    %867 = vmatprep.mubr.f32.mxu0 0.0
    %868 = vmatmul.mubr.f32.gmra.mrb[0].mxu0 %v798
    %v869 = vpop.f32.mrb[0].mxu0
    %v870 = vadd.f32 %v789, %v869
    %v871 = vpop.f32.mrb[0].mxu0
    %872 = vmatprep.mubr.f32.mxu0 0.0
    %873 = vmatmul.mubr.f32.gmra.mrb[0].mxu0 %v801
    %v874 = vpop.f32.mrb[0].mxu0
    %v875 = vadd.f32 %v794, %v874
    %v876 = vpop.f32.mrb[0].mxu0
    %877 = vdwg.mxu0
    %878 = vrot.lane.b32.xlu0 %v311, 96
    %v879 = vpop.permute.xlu0 %878
    %880 = vrot.lane.b32.xlu0 %v312, 96
    %v881 = vpop.permute.xlu0 %880
    %882 = vrot.lane.b32.xlu0 %v311, 48
    %v883 = vpop.permute.xlu0 %882
    %884 = vrot.lane.b32.xlu0 %v312, 48
    %v885 = vpop.permute.xlu0 %884
    %v886 = vsel %vm329, %v879, 0
    %v888 = vsel %vm329, %v881, 0
    %v890 = vsel %vm329, %v883, 0
    %v892 = vsel %vm329, %v885, 0
    %894 = vmatprep.subr.mxu0 0.0
    %895 = vmatpush1.xpose.msra.mxu0 %v890
    %896 = vmatprep.subr.mxu0 0.0
    %897 = vmatpush1.xpose.msra.mxu0 %v892
    %898 = vmatprep.subr.mxu0 0.0
    %899 = vmatpush1.xpose.msra.mxu0 0.0
    %900 = vmatprep.subr.mxu0 0.0
    %901 = vmatpush1.xpose.msra.mxu0 0.0
    %902 = vmatprep.subr.mxu0 0.0
    %903 = vmatpush1.xpose.msra.mxu0 0.0
    %904 = vmatprep.subr.mxu0 0.0
    %905 = vmatpush1.xpose.msra.mxu0 0.0
    %906 = vmatprep.subr.mxu0 0.0
    %907 = vmatpush1.xpose.msra.mxu0 0.0
    %908 = vmatprep.subr.mxu0 0.0
    %909 = vmatpush1.xpose.msra.mxu0 0.0
    %910 = vmatprep.subr.mxu0 0.0
    %911 = vmatpush1.xpose.msra.mxu0 0.0
    %912 = vmatprep.subr.mxu0 0.0
    %913 = vmatpush1.xpose.msra.mxu0 0.0
    %914 = vmatprep.subr.mxu0 0.0
    %915 = vmatpush1.xpose.msra.mxu0 0.0
    %916 = vmatprep.subr.mxu0 0.0
    %917 = vmatpush1.xpose.msra.mxu0 0.0
    %918 = vmatprep.subr.mxu0 0.0
    %919 = vmatpush1.xpose.msra.mxu0 0.0
    %920 = vmatprep.subr.mxu0 0.0
    %921 = vmatpush1.xpose.msra.mxu0 0.0
    %922 = vmatprep.subr.mxu0 0.0
    %923 = vmatpush1.xpose.msra.mxu0 0.0
    %924 = vmatprep.subr.mxu0 0.0
    %925 = vmatpush1.xpose.msra.mxu0 0.0
    %926 = vmatprep.subr.mxu0 0.0
    %927 = vmatpush1.xpose.msra.mxu0 0.0
    %928 = vmatprep.subr.mxu0 0.0
    %929 = vmatpush1.xpose.msra.mxu0 0.0
    %930 = vmatprep.subr.mxu0 0.0
    %931 = vmatpush1.xpose.msra.mxu0 0.0
    %932 = vmatprep.subr.mxu0 0.0
    %933 = vmatpush1.xpose.msra.mxu0 0.0
    %934 = vmatprep.subr.mxu0 0.0
    %935 = vmatpush1.xpose.msra.mxu0 0.0
    %936 = vmatprep.subr.mxu0 0.0
    %937 = vmatpush1.xpose.msra.mxu0 0.0
    %938 = vmatprep.subr.mxu0 0.0
    %939 = vmatpush1.xpose.msra.mxu0 0.0
    %940 = vmatprep.subr.mxu0 0.0
    %941 = vmatpush1.xpose.msra.mxu0 0.0
    %942 = vmatprep.subr.mxu0 0.0
    %943 = vmatpush1.xpose.msra.mxu0 0.0
    %944 = vmatprep.subr.mxu0 0.0
    %945 = vmatpush1.xpose.msra.mxu0 0.0
    %946 = vmatprep.subr.mxu0 0.0
    %947 = vmatpush1.xpose.msra.mxu0 0.0
    %948 = vmatprep.subr.mxu0 0.0
    %949 = vmatpush1.xpose.msra.mxu0 0.0
    %950 = vmatprep.subr.mxu0 0.0
    %951 = vmatpush1.xpose.msra.mxu0 0.0
    %952 = vmatprep.subr.mxu0 0.0
    %953 = vmatpush1.xpose.msra.mxu0 0.0
    %954 = vmatprep.subr.mxu0 0.0
    %955 = vmatpush1.xpose.msra.mxu0 0.0
    %956 = vmatprep.subr.mxu0 0.0
    %957 = vmatpush1.xpose.msra.mxu0 0.0
    %958 = vmatprep.mubr.f32.mxu0 0.0
    %959 = vmatmul.mubr.f32.gmra.mrb[0].mxu0 %v886
    %v960 = vpop.f32.mrb[0].mxu0
    %v961 = vadd.f32 0.0, %v960
    %v962 = vpop.f32.mrb[0].mxu0
    %963 = vmatprep.mubr.f32.mxu0 0.0
    %964 = vmatmul.mubr.f32.gmra.mrb[0].mxu0 %v888
    %v965 = vpop.f32.mrb[0].mxu0
    %v966 = vadd.f32 0.0, %v965
    %v967 = vpop.f32.mrb[0].mxu0
    %968 = vdwg.mxu0
    %v969 = vmul.f32 %v961, 0.25
    %v970 = vmul.f32 %v966, 0.25
    %v971 = vadd.f32 %v969, %v313
    %v972 = vadd.f32 %v970, %v314
    %v973 = vsel %vm329, %v971, -inf
    %974 = vmax.xlane.f32.xlu0 %v973
    %v975 = vpop.xlane.xlu0 %974
    %v976 = vsel %vm329, %v972, -inf
    %977 = vmax.xlane.f32.xlu0 %v976
    %v978 = vpop.xlane.xlu0 %977
    %v979 = vsub.f32 %v971, %v975
    %v980 = vsub.f32 %v972, %v978
    %v981 = vmul.f32 %v979, 1.442695
    %v982 = vpow.pop %v981
    %v983 = vmul.f32 %v980, 1.442695
    %v984 = vpow.pop %v983
    %v985 = vsel %vm329, %v982, 0.0
    %986 = vadd.xlane.f32.xlu0 %v985
    %v987 = vpop.xlane.xlu0 %986
    %v988 = vsel %vm329, %v984, 0.0
    %989 = vadd.xlane.f32.xlu0 %v988
    %v990 = vpop.xlane.xlu0 %989
    %v991 = vrcp.pop %v987
    %v992 = vrcp.pop %v990
    %v993 = vmul.f32 %v982, %v991
    %v994 = vmul.f32 %v984, %v992
    %995 = vrot.lane.b32.xlu0 %v311, 16
    %v996 = vpop.permute.xlu0 %995
    %997 = vrot.lane.b32.xlu0 %v312, 16
    %v998 = vpop.permute.xlu0 %997
    %v1002 = vsel %vm329, %v993, 0
    %v1005 = vsel %vm329, %v994, 0
    %1007 = vmatprep.subr.mxu0 0.0
    %1008 = vmatpush1.msra.mxu0 %v996
    %1009 = vmatprep.subr.mxu0 0.0
    %1010 = vmatpush1.msra.mxu0 %v998
    %1011 = vmatprep.subr.mxu0 0.0
    %1012 = vmatpush1.msra.mxu0 0.0
    %1013 = vmatprep.subr.mxu0 0.0
    %1014 = vmatpush1.msra.mxu0 0.0
    %1015 = vmatprep.subr.mxu0 0.0
    %1016 = vmatpush1.msra.mxu0 0.0
    %1017 = vmatprep.subr.mxu0 0.0
    %1018 = vmatpush1.msra.mxu0 0.0
    %1019 = vmatprep.subr.mxu0 0.0
    %1020 = vmatpush1.msra.mxu0 0.0
    %1021 = vmatprep.subr.mxu0 0.0
    %1022 = vmatpush1.msra.mxu0 0.0
    %1023 = vmatprep.subr.mxu0 0.0
    %1024 = vmatpush1.msra.mxu0 0.0
    %1025 = vmatprep.subr.mxu0 0.0
    %1026 = vmatpush1.msra.mxu0 0.0
    %1027 = vmatprep.subr.mxu0 0.0
    %1028 = vmatpush1.msra.mxu0 0.0
    %1029 = vmatprep.subr.mxu0 0.0
    %1030 = vmatpush1.msra.mxu0 0.0
    %1031 = vmatprep.subr.mxu0 0.0
    %1032 = vmatpush1.msra.mxu0 0.0
    %1033 = vmatprep.subr.mxu0 0.0
    %1034 = vmatpush1.msra.mxu0 0.0
    %1035 = vmatprep.subr.mxu0 0.0
    %1036 = vmatpush1.msra.mxu0 0.0
    %1037 = vmatprep.subr.mxu0 0.0
    %1038 = vmatpush1.msra.mxu0 0.0
    %1039 = vmatprep.subr.mxu0 0.0
    %1040 = vmatpush1.msra.mxu0 0.0
    %1041 = vmatprep.subr.mxu0 0.0
    %1042 = vmatpush1.msra.mxu0 0.0
    %1043 = vmatprep.subr.mxu0 0.0
    %1044 = vmatpush1.msra.mxu0 0.0
    %1045 = vmatprep.subr.mxu0 0.0
    %1046 = vmatpush1.msra.mxu0 0.0
    %1047 = vmatprep.subr.mxu0 0.0
    %1048 = vmatpush1.msra.mxu0 0.0
    %1049 = vmatprep.subr.mxu0 0.0
    %1050 = vmatpush1.msra.mxu0 0.0
    %1051 = vmatprep.subr.mxu0 0.0
    %1052 = vmatpush1.msra.mxu0 0.0
    %1053 = vmatprep.subr.mxu0 0.0
    %1054 = vmatpush1.msra.mxu0 0.0
    %1055 = vmatprep.subr.mxu0 0.0
    %1056 = vmatpush1.msra.mxu0 0.0
    %1057 = vmatprep.subr.mxu0 0.0
    %1058 = vmatpush1.msra.mxu0 0.0
    %1059 = vmatprep.subr.mxu0 0.0
    %1060 = vmatpush1.msra.mxu0 0.0
    %1061 = vmatprep.subr.mxu0 0.0
    %1062 = vmatpush1.msra.mxu0 0.0
    %1063 = vmatprep.subr.mxu0 0.0
    %1064 = vmatpush1.msra.mxu0 0.0
    %1065 = vmatprep.subr.mxu0 0.0
    %1066 = vmatpush1.msra.mxu0 0.0
    %1067 = vmatprep.subr.mxu0 0.0
    %1068 = vmatpush1.msra.mxu0 0.0
    %1069 = vmatprep.subr.mxu0 0.0
    %1070 = vmatpush1.msra.mxu0 0.0
    %1071 = vmatprep.mubr.f32.mxu0 0.0
    %1072 = vmatmul.mubr.f32.gmra.mrb[0].mxu0 %v1002
    %v1073 = vpop.f32.mrb[0].mxu0
    %v1074 = vadd.f32 0.0, %v1073
    %v1075 = vpop.f32.mrb[0].mxu0
    %1076 = vmatprep.mubr.f32.mxu0 0.0
    %1077 = vmatmul.mubr.f32.gmra.mrb[0].mxu0 %v1005
    %v1078 = vpop.f32.mrb[0].mxu0
    %v1079 = vadd.f32 0.0, %v1078
    %v1080 = vpop.f32.mrb[0].mxu0
    %1081 = vdwg.mxu0
    %v1083 = vsel %vm329, %v1074, 0
    %v1086 = vsel %vm329, %v1079, 0
    %1088 = vmatprep.subr.mxu0 0.0
    %1089 = vmatpush1.msra.mxu0 %v319
    %1090 = vmatprep.subr.mxu0 0.0
    %1091 = vmatpush1.msra.mxu0 %v320
    %1092 = vmatprep.subr.mxu0 0.0
    %1093 = vmatpush1.msra.mxu0 0.0
    %1094 = vmatprep.subr.mxu0 0.0
    %1095 = vmatpush1.msra.mxu0 0.0
    %1096 = vmatprep.subr.mxu0 0.0
    %1097 = vmatpush1.msra.mxu0 0.0
    %1098 = vmatprep.subr.mxu0 0.0
    %1099 = vmatpush1.msra.mxu0 0.0
    %1100 = vmatprep.subr.mxu0 0.0
    %1101 = vmatpush1.msra.mxu0 0.0
    %1102 = vmatprep.subr.mxu0 0.0
    %1103 = vmatpush1.msra.mxu0 0.0
    %1104 = vmatprep.subr.mxu0 0.0
    %1105 = vmatpush1.msra.mxu0 0.0
    %1106 = vmatprep.subr.mxu0 0.0
    %1107 = vmatpush1.msra.mxu0 0.0
    %1108 = vmatprep.subr.mxu0 0.0
    %1109 = vmatpush1.msra.mxu0 0.0
    %1110 = vmatprep.subr.mxu0 0.0
    %1111 = vmatpush1.msra.mxu0 0.0
    %1112 = vmatprep.subr.mxu0 0.0
    %1113 = vmatpush1.msra.mxu0 0.0
    %1114 = vmatprep.subr.mxu0 0.0
    %1115 = vmatpush1.msra.mxu0 0.0
    %1116 = vmatprep.subr.mxu0 0.0
    %1117 = vmatpush1.msra.mxu0 0.0
    %1118 = vmatprep.subr.mxu0 0.0
    %1119 = vmatpush1.msra.mxu0 0.0
    %1120 = vmatprep.subr.mxu0 0.0
    %1121 = vmatpush1.msra.mxu0 0.0
    %1122 = vmatprep.subr.mxu0 0.0
    %1123 = vmatpush1.msra.mxu0 0.0
    %1124 = vmatprep.subr.mxu0 0.0
    %1125 = vmatpush1.msra.mxu0 0.0
    %1126 = vmatprep.subr.mxu0 0.0
    %1127 = vmatpush1.msra.mxu0 0.0
    %1128 = vmatprep.subr.mxu0 0.0
    %1129 = vmatpush1.msra.mxu0 0.0
    %1130 = vmatprep.subr.mxu0 0.0
    %1131 = vmatpush1.msra.mxu0 0.0
    %1132 = vmatprep.subr.mxu0 0.0
    %1133 = vmatpush1.msra.mxu0 0.0
    %1134 = vmatprep.subr.mxu0 0.0
    %1135 = vmatpush1.msra.mxu0 0.0
    %1136 = vmatprep.subr.mxu0 0.0
    %1137 = vmatpush1.msra.mxu0 0.0
    %1138 = vmatprep.subr.mxu0 0.0
    %1139 = vmatpush1.msra.mxu0 0.0
    %1140 = vmatprep.subr.mxu0 0.0
    %1141 = vmatpush1.msra.mxu0 0.0
    %1142 = vmatprep.subr.mxu0 0.0
    %1143 = vmatpush1.msra.mxu0 0.0
    %1144 = vmatprep.subr.mxu0 0.0
    %1145 = vmatpush1.msra.mxu0 0.0
    %1146 = vmatprep.subr.mxu0 0.0
    %1147 = vmatpush1.msra.mxu0 0.0
    %1148 = vmatprep.subr.mxu0 0.0
    %1149 = vmatpush1.msra.mxu0 0.0
    %1150 = vmatprep.subr.mxu0 0.0
    %1151 = vmatpush1.msra.mxu0 0.0
    %1152 = vmatprep.mubr.f32.mxu0 0.0
    %1153 = vmatmul.mubr.f32.gmra.mrb[0].mxu0 %v1083
    %v1154 = vpop.f32.mrb[0].mxu0
    %v1155 = vadd.f32 0.0, %v1154
    %v1156 = vpop.f32.mrb[0].mxu0
    %1157 = vmatprep.mubr.f32.mxu0 0.0
    %1158 = vmatmul.mubr.f32.gmra.mrb[0].mxu0 %v1086
    %v1159 = vpop.f32.mrb[0].mxu0
    %v1160 = vadd.f32 0.0, %v1159
    %v1161 = vpop.f32.mrb[0].mxu0
    %1162 = vdwg.mxu0
    %v1163 = vadd.f32 %v870, %v1155
    %v1164 = vadd.f32 %v875, %v1160
    %1165 = vrot.lane.b32.xlu0 %v311, 80
    %v1166 = vpop.permute.xlu0 %1165
    %1167 = vrot.lane.b32.xlu0 %v312, 80
    %v1168 = vpop.permute.xlu0 %1167
    %v1169 = vsel %vm329, %v1166, 0
    %v1171 = vsel %vm329, %v1168, 0
    %1173 = vmatprep.subr.mxu0 0.0
    %1174 = vmatpush1.xpose.msra.mxu0 %v890
    %1175 = vmatprep.subr.mxu0 0.0
    %1176 = vmatpush1.xpose.msra.mxu0 %v892
    %1177 = vmatprep.subr.mxu0 0.0
    %1178 = vmatpush1.xpose.msra.mxu0 0.0
    %1179 = vmatprep.subr.mxu0 0.0
    %1180 = vmatpush1.xpose.msra.mxu0 0.0
    %1181 = vmatprep.subr.mxu0 0.0
    %1182 = vmatpush1.xpose.msra.mxu0 0.0
    %1183 = vmatprep.subr.mxu0 0.0
    %1184 = vmatpush1.xpose.msra.mxu0 0.0
    %1185 = vmatprep.subr.mxu0 0.0
    %1186 = vmatpush1.xpose.msra.mxu0 0.0
    %1187 = vmatprep.subr.mxu0 0.0
    %1188 = vmatpush1.xpose.msra.mxu0 0.0
    %1189 = vmatprep.subr.mxu0 0.0
    %1190 = vmatpush1.xpose.msra.mxu0 0.0
    %1191 = vmatprep.subr.mxu0 0.0
    %1192 = vmatpush1.xpose.msra.mxu0 0.0
    %1193 = vmatprep.subr.mxu0 0.0
    %1194 = vmatpush1.xpose.msra.mxu0 0.0
    %1195 = vmatprep.subr.mxu0 0.0
    %1196 = vmatpush1.xpose.msra.mxu0 0.0
    %1197 = vmatprep.subr.mxu0 0.0
    %1198 = vmatpush1.xpose.msra.mxu0 0.0
    %1199 = vmatprep.subr.mxu0 0.0
    %1200 = vmatpush1.xpose.msra.mxu0 0.0
    %1201 = vmatprep.subr.mxu0 0.0
    %1202 = vmatpush1.xpose.msra.mxu0 0.0
    %1203 = vmatprep.subr.mxu0 0.0
    %1204 = vmatpush1.xpose.msra.mxu0 0.0
    %1205 = vmatprep.subr.mxu0 0.0
    %1206 = vmatpush1.xpose.msra.mxu0 0.0
    %1207 = vmatprep.subr.mxu0 0.0
    %1208 = vmatpush1.xpose.msra.mxu0 0.0
    %1209 = vmatprep.subr.mxu0 0.0
    %1210 = vmatpush1.xpose.msra.mxu0 0.0
    %1211 = vmatprep.subr.mxu0 0.0
    %1212 = vmatpush1.xpose.msra.mxu0 0.0
    %1213 = vmatprep.subr.mxu0 0.0
    %1214 = vmatpush1.xpose.msra.mxu0 0.0
    %1215 = vmatprep.subr.mxu0 0.0
    %1216 = vmatpush1.xpose.msra.mxu0 0.0
    %1217 = vmatprep.subr.mxu0 0.0
    %1218 = vmatpush1.xpose.msra.mxu0 0.0
    %1219 = vmatprep.subr.mxu0 0.0
    %1220 = vmatpush1.xpose.msra.mxu0 0.0
    %1221 = vmatprep.subr.mxu0 0.0
    %1222 = vmatpush1.xpose.msra.mxu0 0.0
    %1223 = vmatprep.subr.mxu0 0.0
    %1224 = vmatpush1.xpose.msra.mxu0 0.0
    %1225 = vmatprep.subr.mxu0 0.0
    %1226 = vmatpush1.xpose.msra.mxu0 0.0
    %1227 = vmatprep.subr.mxu0 0.0
    %1228 = vmatpush1.xpose.msra.mxu0 0.0
    %1229 = vmatprep.subr.mxu0 0.0
    %1230 = vmatpush1.xpose.msra.mxu0 0.0
    %1231 = vmatprep.subr.mxu0 0.0
    %1232 = vmatpush1.xpose.msra.mxu0 0.0
    %1233 = vmatprep.subr.mxu0 0.0
    %1234 = vmatpush1.xpose.msra.mxu0 0.0
    %1235 = vmatprep.subr.mxu0 0.0
    %1236 = vmatpush1.xpose.msra.mxu0 0.0
    %1237 = vmatprep.mubr.f32.mxu0 0.0
    %1238 = vmatmul.mubr.f32.gmra.mrb[0].mxu0 %v1169
    %v1239 = vpop.f32.mrb[0].mxu0
    %v1240 = vadd.f32 0.0, %v1239
    %v1241 = vpop.f32.mrb[0].mxu0
    %1242 = vmatprep.mubr.f32.mxu0 0.0
    %1243 = vmatmul.mubr.f32.gmra.mrb[0].mxu0 %v1171
    %v1244 = vpop.f32.mrb[0].mxu0
    %v1245 = vadd.f32 0.0, %v1244
    %v1246 = vpop.f32.mrb[0].mxu0
    %1247 = vdwg.mxu0
    %v1248 = vmul.f32 %v1240, 0.25
    %v1249 = vmul.f32 %v1245, 0.25
    %v1250 = vadd.f32 %v1248, %v313
    %v1251 = vadd.f32 %v1249, %v314
    %v1252 = vsel %vm329, %v1250, -inf
    %1253 = vmax.xlane.f32.xlu0 %v1252
    %v1254 = vpop.xlane.xlu0 %1253
    %v1255 = vsel %vm329, %v1251, -inf
    %1256 = vmax.xlane.f32.xlu0 %v1255
    %v1257 = vpop.xlane.xlu0 %1256
    %v1258 = vsub.f32 %v1250, %v1254
    %v1259 = vsub.f32 %v1251, %v1257
    %v1260 = vmul.f32 %v1258, 1.442695
    %v1261 = vpow.pop %v1260
    %v1262 = vmul.f32 %v1259, 1.442695
    %v1263 = vpow.pop %v1262
    %v1264 = vsel %vm329, %v1261, 0.0
    %1265 = vadd.xlane.f32.xlu0 %v1264
    %v1266 = vpop.xlane.xlu0 %1265
    %v1267 = vsel %vm329, %v1263, 0.0
    %1268 = vadd.xlane.f32.xlu0 %v1267
    %v1269 = vpop.xlane.xlu0 %1268
    %v1270 = vrcp.pop %v1266
    %v1271 = vrcp.pop %v1269
    %v1272 = vmul.f32 %v1261, %v1270
    %v1273 = vmul.f32 %v1263, %v1271
    %v1275 = vsel %vm329, %v1272, 0
    %v1278 = vsel %vm329, %v1273, 0
    %1280 = vmatprep.subr.mxu0 0.0
    %1281 = vmatpush1.msra.mxu0 %v996
    %1282 = vmatprep.subr.mxu0 0.0
    %1283 = vmatpush1.msra.mxu0 %v998
    %1284 = vmatprep.subr.mxu0 0.0
    %1285 = vmatpush1.msra.mxu0 0.0
    %1286 = vmatprep.subr.mxu0 0.0
    %1287 = vmatpush1.msra.mxu0 0.0
    %1288 = vmatprep.subr.mxu0 0.0
    %1289 = vmatpush1.msra.mxu0 0.0
    %1290 = vmatprep.subr.mxu0 0.0
    %1291 = vmatpush1.msra.mxu0 0.0
    %1292 = vmatprep.subr.mxu0 0.0
    %1293 = vmatpush1.msra.mxu0 0.0
    %1294 = vmatprep.subr.mxu0 0.0
    %1295 = vmatpush1.msra.mxu0 0.0
    %1296 = vmatprep.subr.mxu0 0.0
    %1297 = vmatpush1.msra.mxu0 0.0
    %1298 = vmatprep.subr.mxu0 0.0
    %1299 = vmatpush1.msra.mxu0 0.0
    %1300 = vmatprep.subr.mxu0 0.0
    %1301 = vmatpush1.msra.mxu0 0.0
    %1302 = vmatprep.subr.mxu0 0.0
    %1303 = vmatpush1.msra.mxu0 0.0
    %1304 = vmatprep.subr.mxu0 0.0
    %1305 = vmatpush1.msra.mxu0 0.0
    %1306 = vmatprep.subr.mxu0 0.0
    %1307 = vmatpush1.msra.mxu0 0.0
    %1308 = vmatprep.subr.mxu0 0.0
    %1309 = vmatpush1.msra.mxu0 0.0
    %1310 = vmatprep.subr.mxu0 0.0
    %1311 = vmatpush1.msra.mxu0 0.0
    %1312 = vmatprep.subr.mxu0 0.0
    %1313 = vmatpush1.msra.mxu0 0.0
    %1314 = vmatprep.subr.mxu0 0.0
    %1315 = vmatpush1.msra.mxu0 0.0
    %1316 = vmatprep.subr.mxu0 0.0
    %1317 = vmatpush1.msra.mxu0 0.0
    %1318 = vmatprep.subr.mxu0 0.0
    %1319 = vmatpush1.msra.mxu0 0.0
    %1320 = vmatprep.subr.mxu0 0.0
    %1321 = vmatpush1.msra.mxu0 0.0
    %1322 = vmatprep.subr.mxu0 0.0
    %1323 = vmatpush1.msra.mxu0 0.0
    %1324 = vmatprep.subr.mxu0 0.0
    %1325 = vmatpush1.msra.mxu0 0.0
    %1326 = vmatprep.subr.mxu0 0.0
    %1327 = vmatpush1.msra.mxu0 0.0
    %1328 = vmatprep.subr.mxu0 0.0
    %1329 = vmatpush1.msra.mxu0 0.0
    %1330 = vmatprep.subr.mxu0 0.0
    %1331 = vmatpush1.msra.mxu0 0.0
    %1332 = vmatprep.subr.mxu0 0.0
    %1333 = vmatpush1.msra.mxu0 0.0
    %1334 = vmatprep.subr.mxu0 0.0
    %1335 = vmatpush1.msra.mxu0 0.0
    %1336 = vmatprep.subr.mxu0 0.0
    %1337 = vmatpush1.msra.mxu0 0.0
    %1338 = vmatprep.subr.mxu0 0.0
    %1339 = vmatpush1.msra.mxu0 0.0
    %1340 = vmatprep.subr.mxu0 0.0
    %1341 = vmatpush1.msra.mxu0 0.0
    %1342 = vmatprep.subr.mxu0 0.0
    %1343 = vmatpush1.msra.mxu0 0.0
    %1344 = vmatprep.mubr.f32.mxu0 0.0
    %1345 = vmatmul.mubr.f32.gmra.mrb[0].mxu0 %v1275
    %v1346 = vpop.f32.mrb[0].mxu0
    %v1347 = vadd.f32 0.0, %v1346
    %v1348 = vpop.f32.mrb[0].mxu0
    %1349 = vmatprep.mubr.f32.mxu0 0.0
    %1350 = vmatmul.mubr.f32.gmra.mrb[0].mxu0 %v1278
    %v1351 = vpop.f32.mrb[0].mxu0
    %v1352 = vadd.f32 0.0, %v1351
    %v1353 = vpop.f32.mrb[0].mxu0
    %1354 = vdwg.mxu0
    %v1356 = vsel %vm329, %v1347, 0
    %v1359 = vsel %vm329, %v1352, 0
    %1361 = vmatprep.subr.mxu0 0.0
    %1362 = vmatpush1.msra.mxu0 %v321
    %1363 = vmatprep.subr.mxu0 0.0
    %1364 = vmatpush1.msra.mxu0 %v322
    %1365 = vmatprep.subr.mxu0 0.0
    %1366 = vmatpush1.msra.mxu0 0.0
    %1367 = vmatprep.subr.mxu0 0.0
    %1368 = vmatpush1.msra.mxu0 0.0
    %1369 = vmatprep.subr.mxu0 0.0
    %1370 = vmatpush1.msra.mxu0 0.0
    %1371 = vmatprep.subr.mxu0 0.0
    %1372 = vmatpush1.msra.mxu0 0.0
    %1373 = vmatprep.subr.mxu0 0.0
    %1374 = vmatpush1.msra.mxu0 0.0
    %1375 = vmatprep.subr.mxu0 0.0
    %1376 = vmatpush1.msra.mxu0 0.0
    %1377 = vmatprep.subr.mxu0 0.0
    %1378 = vmatpush1.msra.mxu0 0.0
    %1379 = vmatprep.subr.mxu0 0.0
    %1380 = vmatpush1.msra.mxu0 0.0
    %1381 = vmatprep.subr.mxu0 0.0
    %1382 = vmatpush1.msra.mxu0 0.0
    %1383 = vmatprep.subr.mxu0 0.0
    %1384 = vmatpush1.msra.mxu0 0.0
    %1385 = vmatprep.subr.mxu0 0.0
    %1386 = vmatpush1.msra.mxu0 0.0
    %1387 = vmatprep.subr.mxu0 0.0
    %1388 = vmatpush1.msra.mxu0 0.0
    %1389 = vmatprep.subr.mxu0 0.0
    %1390 = vmatpush1.msra.mxu0 0.0
    %1391 = vmatprep.subr.mxu0 0.0
    %1392 = vmatpush1.msra.mxu0 0.0
    %1393 = vmatprep.subr.mxu0 0.0
    %1394 = vmatpush1.msra.mxu0 0.0
    %1395 = vmatprep.subr.mxu0 0.0
    %1396 = vmatpush1.msra.mxu0 0.0
    %1397 = vmatprep.subr.mxu0 0.0
    %1398 = vmatpush1.msra.mxu0 0.0
    %1399 = vmatprep.subr.mxu0 0.0
    %1400 = vmatpush1.msra.mxu0 0.0
    %1401 = vmatprep.subr.mxu0 0.0
    %1402 = vmatpush1.msra.mxu0 0.0
    %1403 = vmatprep.subr.mxu0 0.0
    %1404 = vmatpush1.msra.mxu0 0.0
    %1405 = vmatprep.subr.mxu0 0.0
    %1406 = vmatpush1.msra.mxu0 0.0
    %1407 = vmatprep.subr.mxu0 0.0
    %1408 = vmatpush1.msra.mxu0 0.0
    %1409 = vmatprep.subr.mxu0 0.0
    %1410 = vmatpush1.msra.mxu0 0.0
    %1411 = vmatprep.subr.mxu0 0.0
    %1412 = vmatpush1.msra.mxu0 0.0
    %1413 = vmatprep.subr.mxu0 0.0
    %1414 = vmatpush1.msra.mxu0 0.0
    %1415 = vmatprep.subr.mxu0 0.0
    %1416 = vmatpush1.msra.mxu0 0.0
    %1417 = vmatprep.subr.mxu0 0.0
    %1418 = vmatpush1.msra.mxu0 0.0
    %1419 = vmatprep.subr.mxu0 0.0
    %1420 = vmatpush1.msra.mxu0 0.0
    %1421 = vmatprep.subr.mxu0 0.0
    %1422 = vmatpush1.msra.mxu0 0.0
    %1423 = vmatprep.subr.mxu0 0.0
    %1424 = vmatpush1.msra.mxu0 0.0
    %1425 = vmatprep.mubr.f32.mxu0 0.0
    %1426 = vmatmul.mubr.f32.gmra.mrb[0].mxu0 %v1356
    %v1427 = vpop.f32.mrb[0].mxu0
    %v1428 = vadd.f32 0.0, %v1427
    %v1429 = vpop.f32.mrb[0].mxu0
    %1430 = vmatprep.mubr.f32.mxu0 0.0
    %1431 = vmatmul.mubr.f32.gmra.mrb[0].mxu0 %v1359
    %v1432 = vpop.f32.mrb[0].mxu0
    %v1433 = vadd.f32 0.0, %v1432
    %v1434 = vpop.f32.mrb[0].mxu0
    %1435 = vdwg.mxu0
    %v1436 = vadd.f32 %v1163, %v1428
    %v1437 = vadd.f32 %v1164, %v1433
    %v1438 = vadd.f32 %v94, %v1436
    %v1439 = vadd.f32 %v95, %v1437
    %v1440 = vld [vmem:[%s2] sm:$0x1]
    %v1441 = vmul.f32 %v1438, %v1438
    %v1442 = vmul.f32 %v1439, %v1439
    %v1443 = vsel %vm99, %v1441, 0.0
    %1444 = vadd.xlane.f32.xlu0 %v1443
    %v1445 = vpop.xlane.xlu0 %1444
    %v1446 = vsel %vm99, %v1442, 0.0
    %1447 = vadd.xlane.f32.xlu0 %v1446
    %v1448 = vpop.xlane.xlu0 %1447
    %v1449 = vmul.f32 %v1445, %v106
    %v1450 = vmul.f32 %v1448, %v106
    %v1451 = vadd.f32 %v1449, 1e-05
    %v1452 = vadd.f32 %v1450, 1e-05
    %v1453 = vrsqrt.pop %v1451
    %v1454 = vrsqrt.pop %v1452
    %v1455 = vmul.f32 %v1438, %v1453
    %v1456 = vmul.f32 %v1439, %v1454
    %v1458 = vlaneseq
    %v1459 = vshrl.u32 %v1458, 7
    %v1460 = vsub.s32 0, %v1459
    %v1461 = vrot.slane %v1440, %v1460
    %v1463 = vmul.f32 %v1455, %v1461
    %v1464 = vmul.f32 %v1456, %v1461
    %v1465 = vld [vmem:[%s5] sm:$0xff]
    %v1466 = vld [vmem:[%s5 + $0x8] sm:$0xff]
    %v1467 = vld [vmem:[%s5 + $0x10] sm:$0xff]
    %v1468 = vld [vmem:[%s5 + $0x18] sm:$0xff]
    %v1469 = vld [vmem:[%s5 + $0x20] sm:$0xff]
    %v1470 = vld [vmem:[%s5 + $0x28] sm:$0xff]
    %v1471 = vld [vmem:[%s5 + $0x30] sm:$0xff]
    %v1472 = vld [vmem:[%s5 + $0x38] sm:$0xff]
    %v1473 = vld [vmem:[%s5 + $0x40] sm:$0xff]
    %v1474 = vld [vmem:[%s5 + $0x48] sm:$0xff]
    %v1475 = vld [vmem:[%s5 + $0x50] sm:$0xff]
    %v1476 = vld [vmem:[%s5 + $0x58] sm:$0xff]
    %v1477 = vld [vmem:[%s5 + $0x60] sm:$0xff]
    %v1478 = vld [vmem:[%s5 + $0x68] sm:$0xff]
    %v1479 = vld [vmem:[%s5 + $0x70] sm:$0xff]
    %v1480 = vld [vmem:[%s5 + $0x78] sm:$0xff]
    %v1482 = vsel %vm99, %v1463, 0
    %v1485 = vsel %vm99, %v1464, 0
    %1487 = vmatprep.subr.mxu0 %v1466
    %1488 = vmatpush1.msra.mxu0 %v1465
    %1489 = vmatprep.subr.mxu0 %v1468
    %1490 = vmatpush1.msra.mxu0 %v1467
    %1491 = vmatprep.subr.mxu0 %v1470
    %1492 = vmatpush1.msra.mxu0 %v1469
    %1493 = vmatprep.subr.mxu0 %v1472
    %1494 = vmatpush1.msra.mxu0 %v1471
    %1495 = vmatprep.subr.mxu0 %v1474
    %1496 = vmatpush1.msra.mxu0 %v1473
    %1497 = vmatprep.subr.mxu0 %v1476
    %1498 = vmatpush1.msra.mxu0 %v1475
    %1499 = vmatprep.subr.mxu0 %v1478
    %1500 = vmatpush1.msra.mxu0 %v1477
    %1501 = vmatprep.subr.mxu0 %v1480
    %1502 = vmatpush1.msra.mxu0 %v1479
    %1503 = vmatprep.subr.mxu0 0.0
    %1504 = vmatpush1.msra.mxu0 0.0
    %1505 = vmatprep.subr.mxu0 0.0
    %1506 = vmatpush1.msra.mxu0 0.0
    %1507 = vmatprep.subr.mxu0 0.0
    %1508 = vmatpush1.msra.mxu0 0.0
    %1509 = vmatprep.subr.mxu0 0.0
    %1510 = vmatpush1.msra.mxu0 0.0
    %1511 = vmatprep.subr.mxu0 0.0
    %1512 = vmatpush1.msra.mxu0 0.0
    %1513 = vmatprep.subr.mxu0 0.0
    %1514 = vmatpush1.msra.mxu0 0.0
    %1515 = vmatprep.subr.mxu0 0.0
    %1516 = vmatpush1.msra.mxu0 0.0
    %1517 = vmatprep.subr.mxu0 0.0
    %1518 = vmatpush1.msra.mxu0 0.0
    %1519 = vmatprep.subr.mxu0 0.0
    %1520 = vmatpush1.msra.mxu0 0.0
    %1521 = vmatprep.subr.mxu0 0.0
    %1522 = vmatpush1.msra.mxu0 0.0
    %1523 = vmatprep.subr.mxu0 0.0
    %1524 = vmatpush1.msra.mxu0 0.0
    %1525 = vmatprep.subr.mxu0 0.0
    %1526 = vmatpush1.msra.mxu0 0.0
    %1527 = vmatprep.subr.mxu0 0.0
    %1528 = vmatpush1.msra.mxu0 0.0
    %1529 = vmatprep.subr.mxu0 0.0
    %1530 = vmatpush1.msra.mxu0 0.0
    %1531 = vmatprep.subr.mxu0 0.0
    %1532 = vmatpush1.msra.mxu0 0.0
    %1533 = vmatprep.subr.mxu0 0.0
    %1534 = vmatpush1.msra.mxu0 0.0
    %1535 = vmatprep.subr.mxu0 0.0
    %1536 = vmatpush1.msra.mxu0 0.0
    %1537 = vmatprep.subr.mxu0 0.0
    %1538 = vmatpush1.msra.mxu0 0.0
    %1539 = vmatprep.subr.mxu0 0.0
    %1540 = vmatpush1.msra.mxu0 0.0
    %1541 = vmatprep.subr.mxu0 0.0
    %1542 = vmatpush1.msra.mxu0 0.0
    %1543 = vmatprep.subr.mxu0 0.0
    %1544 = vmatpush1.msra.mxu0 0.0
    %1545 = vmatprep.subr.mxu0 0.0
    %1546 = vmatpush1.msra.mxu0 0.0
    %1547 = vmatprep.subr.mxu0 0.0
    %1548 = vmatpush1.msra.mxu0 0.0
    %1549 = vmatprep.subr.mxu0 0.0
    %1550 = vmatpush1.msra.mxu0 0.0
    %1551 = vmatprep.mubr.f32.mxu0 0.0
    %1552 = vmatmul.mubr.f32.gmra.mrb[0].mxu0 %v1482
    %v1553 = vpop.f32.mrb[0].mxu0
    %v1554 = vadd.f32 0.0, %v1553
    %v1555 = vpop.f32.mrb[0].mxu0
    %v1556 = vadd.f32 0.0, %v1555
    %1557 = vmatprep.mubr.f32.mxu0 0.0
    %1558 = vmatmul.mubr.f32.gmra.mrb[0].mxu0 %v1485
    %v1559 = vpop.f32.mrb[0].mxu0
    %v1560 = vadd.f32 0.0, %v1559
    %v1561 = vpop.f32.mrb[0].mxu0
    %v1562 = vadd.f32 0.0, %v1561
    %1563 = vdwg.mxu0
    %v1564 = vxor.u32 %v1554, 2147483648
    %v1565 = vxor.u32 %v1560, 2147483648
    %v1566 = vmul.f32 %v1564, 1.442695
    %v1567 = vpow.pop %v1566
    %v1568 = vmul.f32 %v1565, 1.442695
    %v1569 = vpow.pop %v1568
    %v1570 = vadd.f32 %v1567, 1.0
    %v1571 = vadd.f32 %v1569, 1.0
    %v1572 = vrcp.pop %v1570
    %v1573 = vmul.f32 1.0, %v1572
    %v1574 = vrcp.pop %v1571
    %v1575 = vmul.f32 1.0, %v1574
    %v1576 = vmul.f32 %v1554, %v1573
    %v1577 = vmul.f32 %v1560, %v1575
    %v1578 = vmul.f32 %v1576, %v1556
    %v1579 = vmul.f32 %v1577, %v1562
    %v1580 = vld [vmem:[%s6] sm:$0xff]
    %v1581 = vld [vmem:[%s6 + $0x8] sm:$0xff]
    %v1582 = vld [vmem:[%s6 + $0x10] sm:$0xff]
    %v1583 = vld [vmem:[%s6 + $0x18] sm:$0xff]
    %v1584 = vld [vmem:[%s6 + $0x20] sm:$0xff]
    %v1585 = vld [vmem:[%s6 + $0x28] sm:$0xff]
    %v1586 = vld [vmem:[%s6 + $0x30] sm:$0xff]
    %v1587 = vld [vmem:[%s6 + $0x38] sm:$0xff]
    %v1588 = vld [vmem:[%s6 + $0x40] sm:$0xff]
    %v1589 = vld [vmem:[%s6 + $0x48] sm:$0xff]
    %v1590 = vld [vmem:[%s6 + $0x50] sm:$0xff]
    %v1591 = vld [vmem:[%s6 + $0x58] sm:$0xff]
    %v1592 = vld [vmem:[%s6 + $0x60] sm:$0xff]
    %v1593 = vld [vmem:[%s6 + $0x68] sm:$0xff]
    %v1594 = vld [vmem:[%s6 + $0x70] sm:$0xff]
    %v1595 = vld [vmem:[%s6 + $0x78] sm:$0xff]
    %1596 = vmatprep.subr.mxu0 0.0
    %1597 = vmatpush1.msra.mxu0 %v1580
    %1598 = vmatprep.subr.mxu0 0.0
    %1599 = vmatpush1.msra.mxu0 %v1581
    %1600 = vmatprep.subr.mxu0 0.0
    %1601 = vmatpush1.msra.mxu0 %v1582
    %1602 = vmatprep.subr.mxu0 0.0
    %1603 = vmatpush1.msra.mxu0 %v1583
    %1604 = vmatprep.subr.mxu0 0.0
    %1605 = vmatpush1.msra.mxu0 %v1584
    %1606 = vmatprep.subr.mxu0 0.0
    %1607 = vmatpush1.msra.mxu0 %v1585
    %1608 = vmatprep.subr.mxu0 0.0
    %1609 = vmatpush1.msra.mxu0 %v1586
    %1610 = vmatprep.subr.mxu0 0.0
    %1611 = vmatpush1.msra.mxu0 %v1587
    %1612 = vmatprep.subr.mxu0 0.0
    %1613 = vmatpush1.msra.mxu0 %v1588
    %1614 = vmatprep.subr.mxu0 0.0
    %1615 = vmatpush1.msra.mxu0 %v1589
    %1616 = vmatprep.subr.mxu0 0.0
    %1617 = vmatpush1.msra.mxu0 %v1590
    %1618 = vmatprep.subr.mxu0 0.0
    %1619 = vmatpush1.msra.mxu0 %v1591
    %1620 = vmatprep.subr.mxu0 0.0
    %1621 = vmatpush1.msra.mxu0 %v1592
    %1622 = vmatprep.subr.mxu0 0.0
    %1623 = vmatpush1.msra.mxu0 %v1593
    %1624 = vmatprep.subr.mxu0 0.0
    %1625 = vmatpush1.msra.mxu0 %v1594
    %1626 = vmatprep.subr.mxu0 0.0
    %1627 = vmatpush1.msra.mxu0 %v1595
    %1628 = vmatprep.subr.mxu0 0.0
    %1629 = vmatpush1.msra.mxu0 0.0
    %1630 = vmatprep.subr.mxu0 0.0
    %1631 = vmatpush1.msra.mxu0 0.0
    %1632 = vmatprep.subr.mxu0 0.0
    %1633 = vmatpush1.msra.mxu0 0.0
    %1634 = vmatprep.subr.mxu0 0.0
    %1635 = vmatpush1.msra.mxu0 0.0
    %1636 = vmatprep.subr.mxu0 0.0
    %1637 = vmatpush1.msra.mxu0 0.0
    %1638 = vmatprep.subr.mxu0 0.0
    %1639 = vmatpush1.msra.mxu0 0.0
    %1640 = vmatprep.subr.mxu0 0.0
    %1641 = vmatpush1.msra.mxu0 0.0
    %1642 = vmatprep.subr.mxu0 0.0
    %1643 = vmatpush1.msra.mxu0 0.0
    %1644 = vmatprep.subr.mxu0 0.0
    %1645 = vmatpush1.msra.mxu0 0.0
    %1646 = vmatprep.subr.mxu0 0.0
    %1647 = vmatpush1.msra.mxu0 0.0
    %1648 = vmatprep.subr.mxu0 0.0
    %1649 = vmatpush1.msra.mxu0 0.0
    %1650 = vmatprep.subr.mxu0 0.0
    %1651 = vmatpush1.msra.mxu0 0.0
    %1652 = vmatprep.subr.mxu0 0.0
    %1653 = vmatpush1.msra.mxu0 0.0
    %1654 = vmatprep.subr.mxu0 0.0
    %1655 = vmatpush1.msra.mxu0 0.0
    %1656 = vmatprep.subr.mxu0 0.0
    %1657 = vmatpush1.msra.mxu0 0.0
    %1658 = vmatprep.subr.mxu0 0.0
    %1659 = vmatpush1.msra.mxu0 0.0
    %1660 = vmatprep.mubr.f32.mxu0 0.0
    %1661 = vmatmul.mubr.f32.gmra.mrb[0].mxu0 %v1578
    %v1662 = vpop.f32.mrb[0].mxu0
    %v1663 = vadd.f32 0.0, %v1662
    %v1664 = vpop.f32.mrb[0].mxu0
    %1665 = vmatprep.mubr.f32.mxu0 0.0
    %1666 = vmatmul.mubr.f32.gmra.mrb[0].mxu0 %v1579
    %v1667 = vpop.f32.mrb[0].mxu0
    %v1668 = vadd.f32 0.0, %v1667
    %v1669 = vpop.f32.mrb[0].mxu0
    %1670 = vdwg.mxu0
    %v1671 = vadd.f32 %v1438, %v1663
    %v1672 = vadd.f32 %v1439, %v1668
    %1673 = vst.msk [vmem:[#allocation10] sm:$0xff] %vm99, %v1671
    %1674 = vst.msk [vmem:[#allocation10 + $0x8] sm:$0xff] %vm99, %v1672
    // Predicated region
    $region62: #{tpu_custom_call.1} parent=1 // pred_check
      _
    $region63: #{tpu_custom_call.1} parent=1 // pred_check_branch
      %1676 = sbr.rel (0) target = $region65
    $region64: #{tpu_custom_call.1} parent=1 // pred_region
      %s1678 = ssub.s32 256, 256
      %1679 = vsyncadd [#allocation4], %s1678
      %s1680 = sshll.u32 [#allocation10], 4
      %s1681 = int_to_ptr.vmem [resolvable:$true] %s1680
      %1686 = dma.vmem_to_hbm [thread:$0]  %s1681, 256, %s11, [#allocation4], 128, 128, 8
    $region65: #{tpu_custom_call.1} parent=1 // pred_fallthru
      _
    // Predicated region
    $region66: #{tpu_custom_call.1} parent=1 // pred_check
      _
    $region67: #{tpu_custom_call.1} parent=1 // pred_check_branch
      %1688 = sbr.rel (0) target = $region69
    $region68: #{tpu_custom_call.1} parent=1 // pred_region
      %1689 = dma.done [#allocation4], 256
    $region69: #{tpu_custom_call.1} parent=1 // pred_fallthru
      _
    %1690 = vsyncpa [#allocation3], 1
    %1691 = vsyncpa [#allocation6], 1
    %1692 = vsyncpa [#allocation9], 1
    %1693 = vsyncpa [#allocation4], 1

</llo_original>
